<compile_context>
chip_gen: v6e
topology: v6e:2x2x1
jax: 0.10.0
libtpu: 0.0.40
codegen_flags: <defaults>
</compile_context>

<pallas_src>
import functools

import jax
import jax.numpy as jnp
from jax.experimental import pallas as pl
from jax.experimental.pallas import tpu as pltpu

# ------------------------- configuration (small shapes) -------------------------
B = 2              # batch
S = 16             # memory sequence length ("seq" in forward)
HIDDEN = 32        # d_model / hidden_dim
MLP_HIDDEN = 512   # hardcoded in MLP(hidden_dim, 512, vocab_size, 3)
VOCAB = 96         # vocab_size
T = 8              # caption (target) length
VOCAB_PADDED = ((VOCAB + 127) // 128) * 128   # 128: lane-dense output width


# --------------- Pallas kernel: fused decoder-stub + 3-layer MLP ----------------
def _caption_kernel(mem_ref, pos_ref, valid_ref, embed_ref, tgt_ref, keep_ref,
                    w1_ref, b1_ref, w2_ref, b2_ref, w3_ref, b3_ref, o_ref,
                    *, n_batch, t_len, tm):
    # ---- decoder stand-in: masked mean-pool of (memory + pos_embed) over S ----
    mem = mem_ref[...] + pos_ref[...]                            # (S, B, D) f32
    valid = valid_ref[...]                                       # (S, B, 1) f32, 1 = keep
    wsum = jnp.sum(mem * valid, axis=0)                          # (B, D)
    count = jnp.maximum(jnp.sum(valid, axis=0), 1.0)             # (B, 1)
    pooled = wsum / count                                        # (B, D)

    # Broadcast pooled[b] to every row of this block (row m -> batch m // T) via a
    # one-hot selector matmul (no integer division / gather needed in-kernel).
    row0 = pl.program_id(0) * tm
    rows = jax.lax.broadcasted_iota(jnp.int32, (tm, n_batch), 0) + row0
    bids = jax.lax.broadcasted_iota(jnp.int32, (tm, n_batch), 1)
    lower = bids * t_len
    sel = jnp.logical_and(rows >= lower, rows < lower + t_len).astype(jnp.float32)  # (tm, B)
    pooled_rows = jnp.dot(sel, pooled, preferred_element_type=jnp.float32)          # (tm, D)

    # Embedding lookup as a one-hot matmul on the MXU (Mosaic-friendly gather).
    tgt = tgt_ref[...]                                           # (tm, 1) int32
    vocab = embed_ref.shape[0]
    vids = jax.lax.broadcasted_iota(jnp.int32, (tm, vocab), 1)
    onehot = (vids == tgt).astype(jnp.float32)                   # (tm, VOCAB)
    emb = jnp.dot(onehot, embed_ref[...], preferred_element_type=jnp.float32)       # (tm, D)

    x = jnp.tanh(emb * keep_ref[...] + pooled_rows)              # (tm, D), = hs rows

    # ---- MLP(hidden, 512, vocab, 3): Linear->ReLU->Linear->ReLU->Linear ----
    # bf16 weight streaming, f32 accumulation on the MXU.
    h = jnp.dot(x.astype(jnp.bfloat16), w1_ref[...],
                preferred_element_type=jnp.float32) + b1_ref[...]
    h = jnp.maximum(h, 0.0)
    h = jnp.dot(h.astype(jnp.bfloat16), w2_ref[...],
                preferred_element_type=jnp.float32) + b2_ref[...]
    h = jnp.maximum(h, 0.0)
    out = jnp.dot(h.astype(jnp.bfloat16), w3_ref[...],
                  preferred_element_type=jnp.float32) + b3_ref[...]
    o_ref[...] = out.astype(o_ref.dtype)                         # no ReLU on last layer


# --------------------------- CaptionWithDecoder.forward -------------------------
def caption_with_decoder_forward(memory, tgt, tgt_mask, mask=None, pos_embed=None,
                                 *, params, tm=256):
    seq, bs, d_model = memory.shape
    t_len = tgt.shape[1]
    M = bs * t_len
    vocab = params["embed"].shape[0]
    h1 = params["w1"].shape[1]
    h2 = params["w2"].shape[1]
    vp = params["w3"].shape[1]                                   # pre-padded to 128 lanes

    pos = jnp.zeros_like(memory) if pos_embed is None else pos_embed
    if mask is None:
        valid = jnp.ones((seq, bs, 1), memory.dtype)             # 1 = valid memory position
    else:
        valid = (1.0 - mask.astype(memory.dtype)).T[:, :, None]  # (S, B, 1)
    tgt_idx = tgt.reshape(M, 1).astype(jnp.int32)                # b-major, t-minor row order
    keep = 1.0 - tgt_mask.reshape(M, 1).astype(memory.dtype)     # 1 = keep target token

    # Row tiling: one block at today's tiny M; 256-row parallel blocks when M grows.
    tm = min(tm, M)
    n_blocks = pl.cdiv(M, tm)
    m_pad = n_blocks * tm
    if m_pad != M:
        tgt_idx = jnp.pad(tgt_idx, ((0, m_pad - M), (0, 0)))
        keep = jnp.pad(keep, ((0, m_pad - M), (0, 0)))

    kernel = functools.partial(_caption_kernel, n_batch=bs, t_len=t_len, tm=tm)

    out = pl.pallas_call(
        kernel,
        out_shape=jax.ShapeDtypeStruct((m_pad, vp), memory.dtype),
        grid=(n_blocks,),
        in_specs=[
            pl.BlockSpec((seq, bs, d_model), lambda i: (0, 0, 0)),  # memory     (resident)
            pl.BlockSpec((seq, bs, d_model), lambda i: (0, 0, 0)),  # pos_embed  (resident)
            pl.BlockSpec((seq, bs, 1), lambda i: (0, 0, 0)),        # memory-mask weights
            pl.BlockSpec((vocab, d_model), lambda i: (0, 0)),       # embedding table
            pl.BlockSpec((tm, 1), lambda i: (i, 0)),                # tgt ids    (row-tiled)
            pl.BlockSpec((tm, 1), lambda i: (i, 0)),                # tgt keep   (row-tiled)
            pl.BlockSpec((d_model, h1), lambda i: (0, 0)),          # w1 bf16    (resident)
            pl.BlockSpec((1, h1), lambda i: (0, 0)),                # b1
            pl.BlockSpec((h1, h2), lambda i: (0, 0)),               # w2 bf16
            pl.BlockSpec((1, h2), lambda i: (0, 0)),                # b2
            pl.BlockSpec((h2, vp), lambda i: (0, 0)),               # w3 bf16 (padded lanes)
            pl.BlockSpec((1, vp), lambda i: (0, 0)),                # b3
        ],
        out_specs=pl.BlockSpec((tm, vp), lambda i: (i, 0)),
        compiler_params=(pltpu.CompilerParams(dimension_semantics=("parallel",))
                         if n_blocks > 1 else None),
    )(memory, pos, valid, params["embed"], tgt_idx, keep,
      params["w1"], params["b1"], params["w2"], params["b2"], params["w3"], params["b3"])

    return out[:M, :vocab].reshape(bs, t_len, vocab)


# ------------------------------ parameter init -----------------------------------
def init_params(key):
    ks = jax.random.split(key, 4)

    def lin(k, fan_in, fan_out):
        # PyTorch nn.Linear default: U(-1/sqrt(fan_in), 1/sqrt(fan_in))
        bound = 1.0 / (fan_in ** 0.5)
        kw, kb = jax.random.split(k)
        w = jax.random.uniform(kw, (fan_in, fan_out), jnp.float32, -bound, bound)
        b = jax.random.uniform(kb, (fan_out,), jnp.float32, -bound, bound)
        return w, b

    w1, b1 = lin(ks[0], HIDDEN, MLP_HIDDEN)       # MLP(HIDDEN, 512, VOCAB, 3)
    w2, b2 = lin(ks[1], MLP_HIDDEN, MLP_HIDDEN)
    w3, b3 = lin(ks[2], MLP_HIDDEN, VOCAB)

    # Pre-pad the last layer to 128 output lanes (zero columns + zero bias, sliced off in the
    # wrapper) and pre-reshape biases once, so nothing is re-padded/re-copied per call.
    w3 = jnp.pad(w3, ((0, 0), (0, VOCAB_PADDED - VOCAB)))
    b3 = jnp.pad(b3, (0, VOCAB_PADDED - VOCAB))

    embed = jax.random.normal(ks[3], (VOCAB, HIDDEN), jnp.float32) * 0.02  # decoder-stub table

    return dict(
        w1=w1.astype(jnp.bfloat16), b1=b1.reshape(1, MLP_HIDDEN),
        w2=w2.astype(jnp.bfloat16), b2=b2.reshape(1, MLP_HIDDEN),
        w3=w3.astype(jnp.bfloat16), b3=b3.reshape(1, VOCAB_PADDED),
        embed=embed,
    )


if __name__ == "__main__":
    key = jax.random.PRNGKey(0)
    kp, km, kt, kpos = jax.random.split(key, 4)
    params = init_params(kp)

    memory = jax.random.normal(km, (S, B, HIDDEN), jnp.float32)   # (seq, bs, d_model)
    tgt = jax.random.randint(kt, (B, T), 0, VOCAB)
    tgt_mask = jnp.zeros((B, T), dtype=jnp.bool_)
    mask = jnp.zeros((B, S), dtype=jnp.bool_)
    pos_embed = jax.random.normal(kpos, (S, B, HIDDEN), jnp.float32) * 0.02

    fwd = jax.jit(functools.partial(caption_with_decoder_forward, params=params))
    out = fwd(memory, tgt, tgt_mask, mask, pos_embed)
    jax.block_until_ready(out)
    assert out.shape == (B, T, VOCAB), out.shape
    assert out.dtype == jnp.float32
    print("KERNEL_OK")
</pallas_src>

<mosaic_0001>
module attributes {stable_mosaic.version = 11 : i64} {
  func.func @_caption_kernel(%arg0: i32, %arg1: memref<16x2x32xf32, #tpu.memory_space<vmem>>, %arg2: memref<16x2x32xf32, #tpu.memory_space<vmem>>, %arg3: memref<16x2x1xf32, #tpu.memory_space<vmem>>, %arg4: memref<96x32xf32, #tpu.memory_space<vmem>>, %arg5: memref<16x1xi32, #tpu.memory_space<vmem>>, %arg6: memref<16x1xf32, #tpu.memory_space<vmem>>, %arg7: memref<32x512xbf16, #tpu.memory_space<vmem>>, %arg8: memref<1x512xf32, #tpu.memory_space<vmem>>, %arg9: memref<512x512xbf16, #tpu.memory_space<vmem>>, %arg10: memref<1x512xf32, #tpu.memory_space<vmem>>, %arg11: memref<512x128xbf16, #tpu.memory_space<vmem>>, %arg12: memref<1x128xf32, #tpu.memory_space<vmem>>, %arg13: memref<16x128xf32, #tpu.memory_space<vmem>>) attributes {dimension_semantics = [#tpu.dimension_semantics<arbitrary>], iteration_bounds = array<i64: 1>, scalar_prefetch = 0 : i64, scratch_operands = 0 : i64, tpu.core_type = #tpu.core_type<tc>, window_params = [{pipeline_mode = #tpu.pipeline_mode<synchronous>, transform_indices = @transform_0, window_bounds = array<i64: 16, 2, 32>}, {pipeline_mode = #tpu.pipeline_mode<synchronous>, transform_indices = @transform_1, window_bounds = array<i64: 16, 2, 32>}, {pipeline_mode = #tpu.pipeline_mode<synchronous>, transform_indices = @transform_2, window_bounds = array<i64: 16, 2, 1>}, {pipeline_mode = #tpu.pipeline_mode<synchronous>, transform_indices = @transform_3, window_bounds = array<i64: 96, 32>}, {transform_indices = @transform_4, window_bounds = array<i64: 16, 1>}, {transform_indices = @transform_5, window_bounds = array<i64: 16, 1>}, {pipeline_mode = #tpu.pipeline_mode<synchronous>, transform_indices = @transform_6, window_bounds = array<i64: 32, 512>}, {pipeline_mode = #tpu.pipeline_mode<synchronous>, transform_indices = @transform_7, window_bounds = array<i64: 1, 512>}, {pipeline_mode = #tpu.pipeline_mode<synchronous>, transform_indices = @transform_8, window_bounds = array<i64: 512, 512>}, {pipeline_mode = #tpu.pipeline_mode<synchronous>, transform_indices = @transform_9, window_bounds = array<i64: 1, 512>}, {pipeline_mode = #tpu.pipeline_mode<synchronous>, transform_indices = @transform_10, window_bounds = array<i64: 512, 128>}, {pipeline_mode = #tpu.pipeline_mode<synchronous>, transform_indices = @transform_11, window_bounds = array<i64: 1, 128>}, {transform_indices = @transform_12, window_bounds = array<i64: 16, 128>}]} {
    %c0 = arith.constant 0 : index
    %c0_0 = arith.constant 0 : index
    %c0_1 = arith.constant 0 : index
    %0 = vector.load %arg1[%c0, %c0_0, %c0_1] : memref<16x2x32xf32, #tpu.memory_space<vmem>>, vector<16x2x32xf32>
    %c0_2 = arith.constant 0 : index
    %c0_3 = arith.constant 0 : index
    %c0_4 = arith.constant 0 : index
    %1 = vector.load %arg2[%c0_2, %c0_3, %c0_4] : memref<16x2x32xf32, #tpu.memory_space<vmem>>, vector<16x2x32xf32>
    %2 = arith.addf %0, %1 : vector<16x2x32xf32>
    %c0_5 = arith.constant 0 : index
    %c0_6 = arith.constant 0 : index
    %c0_7 = arith.constant 0 : index
    %3 = vector.load %arg3[%c0_5, %c0_6, %c0_7] : memref<16x2x1xf32, #tpu.memory_space<vmem>>, vector<16x2x1xf32>
    %4 = vector.broadcast %3 : vector<16x2x1xf32> to vector<16x2x32xf32>
    %5 = arith.mulf %2, %4 : vector<16x2x32xf32>
    %cst = arith.constant dense<0.000000e+00> : vector<2x32xf32>
    %6 = vector.multi_reduction <add>, %5, %cst [0] : vector<16x2x32xf32> to vector<2x32xf32>
    %cst_8 = arith.constant dense<0.000000e+00> : vector<2x1xf32>
    %7 = vector.multi_reduction <add>, %3, %cst_8 [0] : vector<16x2x1xf32> to vector<2x1xf32>
    %cst_9 = arith.constant 1.000000e+00 : f32
    %8 = vector.broadcast %cst_9 : f32 to vector<2x1xf32>
    %9 = arith.maximumf %7, %8 : vector<2x1xf32>
    %10 = vector.broadcast %9 : vector<2x1xf32> to vector<2x32xf32>
    %11 = arith.divf %6, %10 : vector<2x32xf32>
    %c16_i32 = arith.constant 16 : i32
    %12 = arith.muli %arg0, %c16_i32 : i32
    %13 = tpu.iota {dimensions = array<i32: 0>} : vector<16x2xi32>
    %14 = vector.broadcast %12 : i32 to vector<16x2xi32>
    %15 = arith.addi %13, %14 : vector<16x2xi32>
    %16 = tpu.iota {dimensions = array<i32: 1>} : vector<16x2xi32>
    %c8_i32 = arith.constant 8 : i32
    %17 = vector.broadcast %c8_i32 : i32 to vector<16x2xi32>
    %18 = arith.muli %16, %17 : vector<16x2xi32>
    %19 = arith.cmpi sge, %15, %18 : vector<16x2xi32>
    %c8_i32_10 = arith.constant 8 : i32
    %20 = vector.broadcast %c8_i32_10 : i32 to vector<16x2xi32>
    %21 = arith.addi %18, %20 : vector<16x2xi32>
    %22 = arith.cmpi slt, %15, %21 : vector<16x2xi32>
    %23 = arith.andi %19, %22 : vector<16x2xi1>
    %24 = arith.extui %23 : vector<16x2xi1> to vector<16x2xi32>
    %25 = arith.sitofp %24 : vector<16x2xi32> to vector<16x2xf32>
    %cst_11 = arith.constant dense<0.000000e+00> : vector<16x32xf32>
    %26 = tpu.matmul %25, %11, %cst_11 {dimension_numbers = #tpu.dot_dimension_numbers<[1], [0], [0], [1], [0, 0, 1, 1], [], []>} : vector<16x2xf32>, vector<2x32xf32>, vector<16x32xf32> -> vector<16x32xf32>
    %c0_12 = arith.constant 0 : index
    %c0_13 = arith.constant 0 : index
    %27 = vector.load %arg5[%c0_12, %c0_13] : memref<16x1xi32, #tpu.memory_space<vmem>>, vector<16x1xi32>
    %28 = tpu.iota {dimensions = array<i32: 1>} : vector<16x96xi32>
    %29 = vector.broadcast %27 : vector<16x1xi32> to vector<16x96xi32>
    %30 = arith.cmpi eq, %28, %29 : vector<16x96xi32>
    %31 = arith.extui %30 : vector<16x96xi1> to vector<16x96xi32>
    %32 = arith.sitofp %31 : vector<16x96xi32> to vector<16x96xf32>
    %c0_14 = arith.constant 0 : index
    %c0_15 = arith.constant 0 : index
    %33 = vector.load %arg4[%c0_14, %c0_15] : memref<96x32xf32, #tpu.memory_space<vmem>>, vector<96x32xf32>
    %cst_16 = arith.constant dense<0.000000e+00> : vector<16x32xf32>
    %34 = tpu.matmul %32, %33, %cst_16 {dimension_numbers = #tpu.dot_dimension_numbers<[1], [0], [0], [1], [0, 0, 1, 1], [], []>} : vector<16x96xf32>, vector<96x32xf32>, vector<16x32xf32> -> vector<16x32xf32>
    %c0_17 = arith.constant 0 : index
    %c0_18 = arith.constant 0 : index
    %35 = vector.load %arg6[%c0_17, %c0_18] : memref<16x1xf32, #tpu.memory_space<vmem>>, vector<16x1xf32>
    %36 = vector.broadcast %35 : vector<16x1xf32> to vector<16x32xf32>
    %37 = arith.mulf %34, %36 : vector<16x32xf32>
    %38 = arith.addf %37, %26 : vector<16x32xf32>
    %39 = math.tanh %38 : vector<16x32xf32>
    %40 = arith.truncf %39 : vector<16x32xf32> to vector<16x32xbf16>
    %c0_19 = arith.constant 0 : index
    %c0_20 = arith.constant 0 : index
    %41 = vector.load %arg7[%c0_19, %c0_20] : memref<32x512xbf16, #tpu.memory_space<vmem>>, vector<32x512xbf16>
    %cst_21 = arith.constant dense<0.000000e+00> : vector<16x512xf32>
    %42 = tpu.matmul %40, %41, %cst_21 {dimension_numbers = #tpu.dot_dimension_numbers<[1], [0], [0], [1], [0, 0, 1, 1], [], []>} : vector<16x32xbf16>, vector<32x512xbf16>, vector<16x512xf32> -> vector<16x512xf32>
    %c0_22 = arith.constant 0 : index
    %c0_23 = arith.constant 0 : index
    %43 = vector.load %arg8[%c0_22, %c0_23] : memref<1x512xf32, #tpu.memory_space<vmem>>, vector<1x512xf32>
    %44 = vector.broadcast %43 : vector<1x512xf32> to vector<16x512xf32>
    %45 = arith.addf %42, %44 : vector<16x512xf32>
    %cst_24 = arith.constant 0.000000e+00 : f32
    %46 = vector.broadcast %cst_24 : f32 to vector<16x512xf32>
    %47 = arith.maximumf %45, %46 : vector<16x512xf32>
    %48 = arith.truncf %47 : vector<16x512xf32> to vector<16x512xbf16>
    %c0_25 = arith.constant 0 : index
    %c0_26 = arith.constant 0 : index
    %49 = vector.load %arg9[%c0_25, %c0_26] : memref<512x512xbf16, #tpu.memory_space<vmem>>, vector<512x512xbf16>
    %cst_27 = arith.constant dense<0.000000e+00> : vector<16x512xf32>
    %50 = tpu.matmul %48, %49, %cst_27 {dimension_numbers = #tpu.dot_dimension_numbers<[1], [0], [0], [1], [0, 0, 1, 1], [], []>} : vector<16x512xbf16>, vector<512x512xbf16>, vector<16x512xf32> -> vector<16x512xf32>
    %c0_28 = arith.constant 0 : index
    %c0_29 = arith.constant 0 : index
    %51 = vector.load %arg10[%c0_28, %c0_29] : memref<1x512xf32, #tpu.memory_space<vmem>>, vector<1x512xf32>
    %52 = vector.broadcast %51 : vector<1x512xf32> to vector<16x512xf32>
    %53 = arith.addf %50, %52 : vector<16x512xf32>
    %cst_30 = arith.constant 0.000000e+00 : f32
    %54 = vector.broadcast %cst_30 : f32 to vector<16x512xf32>
    %55 = arith.maximumf %53, %54 : vector<16x512xf32>
    %56 = arith.truncf %55 : vector<16x512xf32> to vector<16x512xbf16>
    %c0_31 = arith.constant 0 : index
    %c0_32 = arith.constant 0 : index
    %57 = vector.load %arg11[%c0_31, %c0_32] : memref<512x128xbf16, #tpu.memory_space<vmem>>, vector<512x128xbf16>
    %cst_33 = arith.constant dense<0.000000e+00> : vector<16x128xf32>
    %58 = tpu.matmul %56, %57, %cst_33 {dimension_numbers = #tpu.dot_dimension_numbers<[1], [0], [0], [1], [0, 0, 1, 1], [], []>} : vector<16x512xbf16>, vector<512x128xbf16>, vector<16x128xf32> -> vector<16x128xf32>
    %c0_34 = arith.constant 0 : index
    %c0_35 = arith.constant 0 : index
    %59 = vector.load %arg12[%c0_34, %c0_35] : memref<1x128xf32, #tpu.memory_space<vmem>>, vector<1x128xf32>
    %60 = vector.broadcast %59 : vector<1x128xf32> to vector<16x128xf32>
    %61 = arith.addf %58, %60 : vector<16x128xf32>
    %c0_36 = arith.constant 0 : index
    %c0_37 = arith.constant 0 : index
    %62 = vector.load %arg13[%c0_36, %c0_37] : memref<16x128xf32, #tpu.memory_space<vmem>>, vector<16x128xf32>
    tpu.vector_store %arg13[%c0_36, %c0_37], %61 {strides = array<i32>} : memref<16x128xf32, #tpu.memory_space<vmem>>, vector<16x128xf32>,
    return
  }
  func.func @transform_0(%arg0: i32) -> (i32, i32, i32) {
    %c0_i32 = arith.constant 0 : i32
    %c0_i32_0 = arith.constant 0 : i32
    %c0_i32_1 = arith.constant 0 : i32
    %c0_i32_2 = arith.constant 0 : i32
    return %c0_i32, %c0_i32_0, %c0_i32_1 : i32, i32, i32
  }
  func.func @transform_1(%arg0: i32) -> (i32, i32, i32) {
    %c0_i32 = arith.constant 0 : i32
    %c0_i32_0 = arith.constant 0 : i32
    %c0_i32_1 = arith.constant 0 : i32
    %c0_i32_2 = arith.constant 0 : i32
    return %c0_i32, %c0_i32_0, %c0_i32_1 : i32, i32, i32
  }
  func.func @transform_2(%arg0: i32) -> (i32, i32, i32) {
    %c0_i32 = arith.constant 0 : i32
    %c0_i32_0 = arith.constant 0 : i32
    %c0_i32_1 = arith.constant 0 : i32
    %c0_i32_2 = arith.constant 0 : i32
    return %c0_i32, %c0_i32_0, %c0_i32_1 : i32, i32, i32
  }
  func.func @transform_3(%arg0: i32) -> (i32, i32) {
    %c0_i32 = arith.constant 0 : i32
    %c0_i32_0 = arith.constant 0 : i32
    %c0_i32_1 = arith.constant 0 : i32
    return %c0_i32, %c0_i32_0 : i32, i32
  }
  func.func @transform_4(%arg0: i32) -> (i32, i32) {
    %c0_i32 = arith.constant 0 : i32
    %c0_i32_0 = arith.constant 0 : i32
    return %arg0, %c0_i32 : i32, i32
  }
  func.func @transform_5(%arg0: i32) -> (i32, i32) {
    %c0_i32 = arith.constant 0 : i32
    %c0_i32_0 = arith.constant 0 : i32
    return %arg0, %c0_i32 : i32, i32
  }
  func.func @transform_6(%arg0: i32) -> (i32, i32) {
    %c0_i32 = arith.constant 0 : i32
    %c0_i32_0 = arith.constant 0 : i32
    %c0_i32_1 = arith.constant 0 : i32
    return %c0_i32, %c0_i32_0 : i32, i32
  }
  func.func @transform_7(%arg0: i32) -> (i32, i32) {
    %c0_i32 = arith.constant 0 : i32
    %c0_i32_0 = arith.constant 0 : i32
    %c0_i32_1 = arith.constant 0 : i32
    return %c0_i32, %c0_i32_0 : i32, i32
  }
  func.func @transform_8(%arg0: i32) -> (i32, i32) {
    %c0_i32 = arith.constant 0 : i32
    %c0_i32_0 = arith.constant 0 : i32
    %c0_i32_1 = arith.constant 0 : i32
    return %c0_i32, %c0_i32_0 : i32, i32
  }
  func.func @transform_9(%arg0: i32) -> (i32, i32) {
    %c0_i32 = arith.constant 0 : i32
    %c0_i32_0 = arith.constant 0 : i32
    %c0_i32_1 = arith.constant 0 : i32
    return %c0_i32, %c0_i32_0 : i32, i32
  }
  func.func @transform_10(%arg0: i32) -> (i32, i32) {
    %c0_i32 = arith.constant 0 : i32
    %c0_i32_0 = arith.constant 0 : i32
    %c0_i32_1 = arith.constant 0 : i32
    return %c0_i32, %c0_i32_0 : i32, i32
  }
  func.func @transform_11(%arg0: i32) -> (i32, i32) {
    %c0_i32 = arith.constant 0 : i32
    %c0_i32_0 = arith.constant 0 : i32
    %c0_i32_1 = arith.constant 0 : i32
    return %c0_i32, %c0_i32_0 : i32, i32
  }
  func.func @transform_12(%arg0: i32) -> (i32, i32) {
    %c0_i32 = arith.constant 0 : i32
    %c0_i32_0 = arith.constant 0 : i32
    return %arg0, %c0_i32 : i32, i32
  }
}

</mosaic_0001>

<llo_original>
// kernel: caption_with_decoder_forward.1
$region0: #{caption_with_decoder_forward.1}
  #allocation0 [shape = 'u32[]', space=smem, size = 0x4, offset = 0x4, fixed_abs, tag = 'smem constant byte address 0x4 - core index']
  #allocation1 [shape = 'u32[144,128]{1,0:T(1,128)}', space=vmem, size = 0x12000, scoped, tag = 'internal scratch']
  %s0 = inlined_call_operand.hbm [shape: f32[16,2,32], index: 0, kind: input, shape index: {}]
  %s1 = inlined_call_operand.hbm [shape: f32[16,2,32], index: 1, kind: input, shape index: {}]
  %s2 = inlined_call_operand.vmem [shape: f32[16,2,1], index: 2, kind: input, shape index: {}]
  %s3 = inlined_call_operand.hbm [shape: f32[96,32], index: 3, kind: input, shape index: {}]
  %s4 = inlined_call_operand.vmem [shape: s32[16,1], index: 4, kind: input, shape index: {}]
  %s5 = inlined_call_operand.vmem [shape: f32[16,1], index: 5, kind: input, shape index: {}]
  %s6 = inlined_call_operand.vmem [shape: bf16[32,512], index: 6, kind: input, shape index: {}]
  %s7 = inlined_call_operand.vmem [shape: f32[1,512], index: 7, kind: input, shape index: {}]
  %s8 = inlined_call_operand.hbm [shape: bf16[512,512], index: 8, kind: input, shape index: {}]
  %s9 = inlined_call_operand.vmem [shape: f32[1,512], index: 9, kind: input, shape index: {}]
  %s10 = inlined_call_operand.hbm [shape: bf16[512,128], index: 10, kind: input, shape index: {}]
  %s11 = inlined_call_operand.vmem [shape: f32[1,128], index: 11, kind: input, shape index: {}]
  %s12 = inlined_call_operand.vmem [shape: f32[16,128], index: 12, kind: output, shape index: {}]
  %s13 = sld [smem:[#allocation0]]
  $region78: #{caption_with_decoder_forward.1} parent=0
    _
  %s15 = ssub.s32 1, %s13
  %s16 = scalar_select 0, %s15, %s13
  $region1: #{caption_with_decoder_forward.1} parent=0
    #allocation2 [shape = 'u8[16384]{0}', space=vmem, size = 0x4000, scoped, tag = 'input window, operand 0, single buffered']
    #allocation3 [shape = 's32[1]{0}', space=sflag, size = 0x4, scoped, tag = 'scoped memory for caption_with_decoder_forward.1']
    #allocation4 [shape = 'u8[16384]{0}', space=vmem, size = 0x4000, scoped, tag = 'input window, operand 1, single buffered']
    #allocation5 [shape = 's32[1]{0}', space=sflag, size = 0x4, scoped, tag = 'scoped memory for caption_with_decoder_forward.1']
    #allocation6 [shape = 'u8[49152]{0}', space=vmem, size = 0xc000, scoped, tag = 'input window, operand 3, single buffered']
    #allocation7 [shape = 'u8[524288]{0}', space=vmem, size = 0x80000, scoped, tag = 'input window, operand 8, single buffered']
    #allocation8 [shape = 's32[1]{0}', space=sflag, size = 0x4, scoped, tag = 'scoped memory for caption_with_decoder_forward.1']
    #allocation9 [shape = 'u8[131072]{0}', space=vmem, size = 0x20000, scoped, tag = 'input window, operand 10, single buffered']
    %17 = vsyncpa [#allocation3], 0
    %18 = vsyncpa [#allocation5], 0
    %19 = vsyncpa [#allocation8], 0
    // Predicated region
    $region2: #{caption_with_decoder_forward.1} parent=1 // pred_check
      _
    $region3: #{caption_with_decoder_forward.1} parent=1 // pred_check_branch
      %21 = sbr.rel (0) target = $region5
    $region4: #{caption_with_decoder_forward.1} parent=1 // pred_region
      %s23 = ssub.s32 512, 512
      %24 = vsyncadd [#allocation3], %s23
      %s25 = sshll.u32 [#allocation2], 4
      %s26 = int_to_ptr.vmem [resolvable:$true] %s25
      %31 = dma.hbm_to_vmem [thread:$0]  %s0, 512, %s26, [#allocation3], 32, 32, 2
    $region5: #{caption_with_decoder_forward.1} parent=1 // pred_fallthru
      _
    // Predicated region
    $region6: #{caption_with_decoder_forward.1} parent=1 // pred_check
      _
    $region7: #{caption_with_decoder_forward.1} parent=1 // pred_check_branch
      %33 = sbr.rel (0) target = $region9
    $region8: #{caption_with_decoder_forward.1} parent=1 // pred_region
      %s35 = ssub.s32 512, 512
      %36 = vsyncadd [#allocation5], %s35
      %s37 = sshll.u32 [#allocation4], 4
      %s38 = int_to_ptr.vmem [resolvable:$true] %s37
      %43 = dma.hbm_to_vmem [thread:$0]  %s1, 512, %s38, [#allocation5], 32, 32, 2
    $region9: #{caption_with_decoder_forward.1} parent=1 // pred_fallthru
      _
    // Predicated region
    $region10: #{caption_with_decoder_forward.1} parent=1 // pred_check
      _
    $region11: #{caption_with_decoder_forward.1} parent=1 // pred_check_branch
      %45 = sbr.rel (0) target = $region13
    $region12: #{caption_with_decoder_forward.1} parent=1 // pred_region
      _
    $region13: #{caption_with_decoder_forward.1} parent=1 // pred_fallthru
      _
    // Predicated region
    $region14: #{caption_with_decoder_forward.1} parent=1 // pred_check
      _
    $region15: #{caption_with_decoder_forward.1} parent=1 // pred_check_branch
      %47 = sbr.rel (0) target = $region17
    $region16: #{caption_with_decoder_forward.1} parent=1 // pred_region
      %s49 = ssub.s32 1536, 1536
      %50 = vsyncadd [#allocation5], %s49
      %s51 = sshll.u32 [#allocation6], 4
      %s52 = int_to_ptr.vmem [resolvable:$true] %s51
      %57 = dma.hbm_to_vmem [thread:$0]  %s3, 1536, %s52, [#allocation5], 128, 128, 8
    $region17: #{caption_with_decoder_forward.1} parent=1 // pred_fallthru
      _
    // Predicated region
    $region18: #{caption_with_decoder_forward.1} parent=1 // pred_check
      _
    $region19: #{caption_with_decoder_forward.1} parent=1 // pred_check_branch
      %59 = sbr.rel (0) target = $region21
    $region20: #{caption_with_decoder_forward.1} parent=1 // pred_region
      _
    $region21: #{caption_with_decoder_forward.1} parent=1 // pred_fallthru
      _
    // Predicated region
    $region22: #{caption_with_decoder_forward.1} parent=1 // pred_check
      _
    $region23: #{caption_with_decoder_forward.1} parent=1 // pred_check_branch
      %61 = sbr.rel (0) target = $region25
    $region24: #{caption_with_decoder_forward.1} parent=1 // pred_region
      _
    $region25: #{caption_with_decoder_forward.1} parent=1 // pred_fallthru
      _
    // Predicated region
    $region26: #{caption_with_decoder_forward.1} parent=1 // pred_check
      _
    $region27: #{caption_with_decoder_forward.1} parent=1 // pred_check_branch
      %63 = sbr.rel (0) target = $region29
    $region28: #{caption_with_decoder_forward.1} parent=1 // pred_region
      _
    $region29: #{caption_with_decoder_forward.1} parent=1 // pred_fallthru
      _
    // Predicated region
    $region30: #{caption_with_decoder_forward.1} parent=1 // pred_check
      _
    $region31: #{caption_with_decoder_forward.1} parent=1 // pred_check_branch
      %65 = sbr.rel (0) target = $region33
    $region32: #{caption_with_decoder_forward.1} parent=1 // pred_region
      _
    $region33: #{caption_with_decoder_forward.1} parent=1 // pred_fallthru
      _
    // Predicated region
    $region34: #{caption_with_decoder_forward.1} parent=1 // pred_check
      _
    $region35: #{caption_with_decoder_forward.1} parent=1 // pred_check_branch
      %67 = sbr.rel (0) target = $region37
    $region36: #{caption_with_decoder_forward.1} parent=1 // pred_region
      %s69 = ssub.s32 16384, 16384
      %70 = vsyncadd [#allocation8], %s69
      %s71 = sshll.u32 [#allocation7], 4
      %s72 = int_to_ptr.vmem [resolvable:$true] %s71
      %77 = dma.hbm_to_vmem [thread:$0]  %s8, 16384, %s72, [#allocation8], 256, 256, 16
    $region37: #{caption_with_decoder_forward.1} parent=1 // pred_fallthru
      _
    // Predicated region
    $region38: #{caption_with_decoder_forward.1} parent=1 // pred_check
      _
    $region39: #{caption_with_decoder_forward.1} parent=1 // pred_check_branch
      %79 = sbr.rel (0) target = $region41
    $region40: #{caption_with_decoder_forward.1} parent=1 // pred_region
      _
    $region41: #{caption_with_decoder_forward.1} parent=1 // pred_fallthru
      _
    // Predicated region
    $region42: #{caption_with_decoder_forward.1} parent=1 // pred_check
      _
    $region43: #{caption_with_decoder_forward.1} parent=1 // pred_check_branch
      %81 = sbr.rel (0) target = $region45
    $region44: #{caption_with_decoder_forward.1} parent=1 // pred_region
      %s83 = ssub.s32 4096, 4096
      %84 = vsyncadd [#allocation8], %s83
      %s85 = sshll.u32 [#allocation9], 4
      %s86 = int_to_ptr.vmem [resolvable:$true] %s85
      %91 = dma.hbm_to_vmem [thread:$0]  %s10, 4096, %s86, [#allocation8], 64, 64, 4
    $region45: #{caption_with_decoder_forward.1} parent=1 // pred_fallthru
      _
    // Predicated region
    $region46: #{caption_with_decoder_forward.1} parent=1 // pred_check
      _
    $region47: #{caption_with_decoder_forward.1} parent=1 // pred_check_branch
      %93 = sbr.rel (0) target = $region49
    $region48: #{caption_with_decoder_forward.1} parent=1 // pred_region
      _
    $region49: #{caption_with_decoder_forward.1} parent=1 // pred_fallthru
      _
    // Predicated region
    $region50: #{caption_with_decoder_forward.1} parent=1 // pred_check
      _
    $region51: #{caption_with_decoder_forward.1} parent=1 // pred_check_branch
      %95 = sbr.rel (0) target = $region53
    $region52: #{caption_with_decoder_forward.1} parent=1 // pred_region
      %96 = dma.done [#allocation3], 512
    $region53: #{caption_with_decoder_forward.1} parent=1 // pred_fallthru
      _
    // Predicated region
    $region54: #{caption_with_decoder_forward.1} parent=1 // pred_check
      _
    $region55: #{caption_with_decoder_forward.1} parent=1 // pred_check_branch
      %98 = sbr.rel (0) target = $region57
    $region56: #{caption_with_decoder_forward.1} parent=1 // pred_region
      %99 = dma.done [#allocation5], 512
    $region57: #{caption_with_decoder_forward.1} parent=1 // pred_fallthru
      _
    // Predicated region
    $region58: #{caption_with_decoder_forward.1} parent=1 // pred_check
      _
    $region59: #{caption_with_decoder_forward.1} parent=1 // pred_check_branch
      %101 = sbr.rel (0) target = $region61
    $region60: #{caption_with_decoder_forward.1} parent=1 // pred_region
      %102 = dma.done [#allocation5], 1536
    $region61: #{caption_with_decoder_forward.1} parent=1 // pred_fallthru
      _
    // Predicated region
    $region62: #{caption_with_decoder_forward.1} parent=1 // pred_check
      _
    $region63: #{caption_with_decoder_forward.1} parent=1 // pred_check_branch
      %104 = sbr.rel (0) target = $region65
    $region64: #{caption_with_decoder_forward.1} parent=1 // pred_region
      %105 = dma.done [#allocation8], 16384
    $region65: #{caption_with_decoder_forward.1} parent=1 // pred_fallthru
      _
    // Predicated region
    $region66: #{caption_with_decoder_forward.1} parent=1 // pred_check
      _
    $region67: #{caption_with_decoder_forward.1} parent=1 // pred_check_branch
      %107 = sbr.rel (0) target = $region69
    $region68: #{caption_with_decoder_forward.1} parent=1 // pred_region
      %108 = dma.done [#allocation8], 4096
    $region69: #{caption_with_decoder_forward.1} parent=1 // pred_fallthru
      _
    %v110 = vld [vmem:[#allocation2] sm:$0x3]
    %v111 = vld [vmem:[#allocation2 + $0x2] sm:$0x3]
    %v112 = vld [vmem:[#allocation2 + $0x4] sm:$0x3]
    %v113 = vld [vmem:[#allocation2 + $0x6] sm:$0x3]
    %v114 = vld [vmem:[#allocation2 + $0x8] sm:$0x3]
    %v115 = vld [vmem:[#allocation2 + $0xa] sm:$0x3]
    %v116 = vld [vmem:[#allocation2 + $0xc] sm:$0x3]
    %v117 = vld [vmem:[#allocation2 + $0xe] sm:$0x3]
    %v118 = vld [vmem:[#allocation2 + $0x10] sm:$0x3]
    %v119 = vld [vmem:[#allocation2 + $0x12] sm:$0x3]
    %v120 = vld [vmem:[#allocation2 + $0x14] sm:$0x3]
    %v121 = vld [vmem:[#allocation2 + $0x16] sm:$0x3]
    %v122 = vld [vmem:[#allocation2 + $0x18] sm:$0x3]
    %v123 = vld [vmem:[#allocation2 + $0x1a] sm:$0x3]
    %v124 = vld [vmem:[#allocation2 + $0x1c] sm:$0x3]
    %v125 = vld [vmem:[#allocation2 + $0x1e] sm:$0x3]
    %v126 = vld [vmem:[#allocation4] sm:$0x3]
    %v127 = vld [vmem:[#allocation4 + $0x2] sm:$0x3]
    %v128 = vld [vmem:[#allocation4 + $0x4] sm:$0x3]
    %v129 = vld [vmem:[#allocation4 + $0x6] sm:$0x3]
    %v130 = vld [vmem:[#allocation4 + $0x8] sm:$0x3]
    %v131 = vld [vmem:[#allocation4 + $0xa] sm:$0x3]
    %v132 = vld [vmem:[#allocation4 + $0xc] sm:$0x3]
    %v133 = vld [vmem:[#allocation4 + $0xe] sm:$0x3]
    %v134 = vld [vmem:[#allocation4 + $0x10] sm:$0x3]
    %v135 = vld [vmem:[#allocation4 + $0x12] sm:$0x3]
    %v136 = vld [vmem:[#allocation4 + $0x14] sm:$0x3]
    %v137 = vld [vmem:[#allocation4 + $0x16] sm:$0x3]
    %v138 = vld [vmem:[#allocation4 + $0x18] sm:$0x3]
    %v139 = vld [vmem:[#allocation4 + $0x1a] sm:$0x3]
    %v140 = vld [vmem:[#allocation4 + $0x1c] sm:$0x3]
    %v141 = vld [vmem:[#allocation4 + $0x1e] sm:$0x3]
    %v142 = vadd.f32 %v110, %v126
    %v143 = vadd.f32 %v111, %v127
    %v144 = vadd.f32 %v112, %v128
    %v145 = vadd.f32 %v113, %v129
    %v146 = vadd.f32 %v114, %v130
    %v147 = vadd.f32 %v115, %v131
    %v148 = vadd.f32 %v116, %v132
    %v149 = vadd.f32 %v117, %v133
    %v150 = vadd.f32 %v118, %v134
    %v151 = vadd.f32 %v119, %v135
    %v152 = vadd.f32 %v120, %v136
    %v153 = vadd.f32 %v121, %v137
    %v154 = vadd.f32 %v122, %v138
    %v155 = vadd.f32 %v123, %v139
    %v156 = vadd.f32 %v124, %v140
    %v157 = vadd.f32 %v125, %v141
    %v158 = vld [vmem:[%s2] sm:$0x3]
    %v159 = vld [vmem:[%s2 + $0x2] sm:$0x3]
    %v160 = vld [vmem:[%s2 + $0x4] sm:$0x3]
    %v161 = vld [vmem:[%s2 + $0x6] sm:$0x3]
    %v162 = vld [vmem:[%s2 + $0x8] sm:$0x3]
    %v163 = vld [vmem:[%s2 + $0xa] sm:$0x3]
    %v164 = vld [vmem:[%s2 + $0xc] sm:$0x3]
    %v165 = vld [vmem:[%s2 + $0xe] sm:$0x3]
    %v166 = vld [vmem:[%s2 + $0x10] sm:$0x3]
    %v167 = vld [vmem:[%s2 + $0x12] sm:$0x3]
    %v168 = vld [vmem:[%s2 + $0x14] sm:$0x3]
    %v169 = vld [vmem:[%s2 + $0x16] sm:$0x3]
    %v170 = vld [vmem:[%s2 + $0x18] sm:$0x3]
    %v171 = vld [vmem:[%s2 + $0x1a] sm:$0x3]
    %v172 = vld [vmem:[%s2 + $0x1c] sm:$0x3]
    %v173 = vld [vmem:[%s2 + $0x1e] sm:$0x3]
    %175 = vset.pattern.permute.xlu0 0
    %176 = vperm.xlu0 %175, %v158
    %v177 = vpop.permute.xlu0 %176
    %180 = vset.pattern.permute.xlu0 0
    %181 = vperm.xlu0 %180, %v159
    %v182 = vpop.permute.xlu0 %181
    %185 = vset.pattern.permute.xlu0 0
    %186 = vperm.xlu0 %185, %v160
    %v187 = vpop.permute.xlu0 %186
    %190 = vset.pattern.permute.xlu0 0
    %191 = vperm.xlu0 %190, %v161
    %v192 = vpop.permute.xlu0 %191
    %195 = vset.pattern.permute.xlu0 0
    %196 = vperm.xlu0 %195, %v162
    %v197 = vpop.permute.xlu0 %196
    %200 = vset.pattern.permute.xlu0 0
    %201 = vperm.xlu0 %200, %v163
    %v202 = vpop.permute.xlu0 %201
    %205 = vset.pattern.permute.xlu0 0
    %206 = vperm.xlu0 %205, %v164
    %v207 = vpop.permute.xlu0 %206
    %210 = vset.pattern.permute.xlu0 0
    %211 = vperm.xlu0 %210, %v165
    %v212 = vpop.permute.xlu0 %211
    %215 = vset.pattern.permute.xlu0 0
    %216 = vperm.xlu0 %215, %v166
    %v217 = vpop.permute.xlu0 %216
    %220 = vset.pattern.permute.xlu0 0
    %221 = vperm.xlu0 %220, %v167
    %v222 = vpop.permute.xlu0 %221
    %225 = vset.pattern.permute.xlu0 0
    %226 = vperm.xlu0 %225, %v168
    %v227 = vpop.permute.xlu0 %226
    %230 = vset.pattern.permute.xlu0 0
    %231 = vperm.xlu0 %230, %v169
    %v232 = vpop.permute.xlu0 %231
    %235 = vset.pattern.permute.xlu0 0
    %236 = vperm.xlu0 %235, %v170
    %v237 = vpop.permute.xlu0 %236
    %240 = vset.pattern.permute.xlu0 0
    %241 = vperm.xlu0 %240, %v171
    %v242 = vpop.permute.xlu0 %241
    %245 = vset.pattern.permute.xlu0 0
    %246 = vperm.xlu0 %245, %v172
    %v247 = vpop.permute.xlu0 %246
    %250 = vset.pattern.permute.xlu0 0
    %251 = vperm.xlu0 %250, %v173
    %v252 = vpop.permute.xlu0 %251
    %v254 = vmul.f32 %v142, %v177
    %v255 = vmul.f32 %v143, %v182
    %v256 = vmul.f32 %v144, %v187
    %v257 = vmul.f32 %v145, %v192
    %v258 = vmul.f32 %v146, %v197
    %v259 = vmul.f32 %v147, %v202
    %v260 = vmul.f32 %v148, %v207
    %v261 = vmul.f32 %v149, %v212
    %v262 = vmul.f32 %v150, %v217
    %v263 = vmul.f32 %v151, %v222
    %v264 = vmul.f32 %v152, %v227
    %v265 = vmul.f32 %v153, %v232
    %v266 = vmul.f32 %v154, %v237
    %v267 = vmul.f32 %v155, %v242
    %v268 = vmul.f32 %v156, %v247
    %v269 = vmul.f32 %v157, %v252
    %vm270 = vcmask 254976
    %v271 = vsel %vm270, %v254, 0.0
    %v272 = vsel %vm270, %v255, 0.0
    %v273 = vadd.f32 %v271, %v272
    %v274 = vsel %vm270, %v256, 0.0
    %v275 = vadd.f32 %v273, %v274
    %v276 = vsel %vm270, %v257, 0.0
    %v277 = vadd.f32 %v275, %v276
    %v278 = vsel %vm270, %v258, 0.0
    %v279 = vadd.f32 %v277, %v278
    %v280 = vsel %vm270, %v259, 0.0
    %v281 = vadd.f32 %v279, %v280
    %v282 = vsel %vm270, %v260, 0.0
    %v283 = vadd.f32 %v281, %v282
    %v284 = vsel %vm270, %v261, 0.0
    %v285 = vadd.f32 %v283, %v284
    %v286 = vsel %vm270, %v262, 0.0
    %v287 = vadd.f32 %v285, %v286
    %v288 = vsel %vm270, %v263, 0.0
    %v289 = vadd.f32 %v287, %v288
    %v290 = vsel %vm270, %v264, 0.0
    %v291 = vadd.f32 %v289, %v290
    %v292 = vsel %vm270, %v265, 0.0
    %v293 = vadd.f32 %v291, %v292
    %v294 = vsel %vm270, %v266, 0.0
    %v295 = vadd.f32 %v293, %v294
    %v296 = vsel %vm270, %v267, 0.0
    %v297 = vadd.f32 %v295, %v296
    %v298 = vsel %vm270, %v268, 0.0
    %v299 = vadd.f32 %v297, %v298
    %v300 = vsel %vm270, %v269, 0.0
    %v301 = vadd.f32 %v299, %v300
    %vm302 = vcmask 1024
    %v303 = vsel %vm302, %v158, 0.0
    %v304 = vsel %vm302, %v159, 0.0
    %v305 = vadd.f32 %v303, %v304
    %v306 = vsel %vm302, %v160, 0.0
    %v307 = vadd.f32 %v305, %v306
    %v308 = vsel %vm302, %v161, 0.0
    %v309 = vadd.f32 %v307, %v308
    %v310 = vsel %vm302, %v162, 0.0
    %v311 = vadd.f32 %v309, %v310
    %v312 = vsel %vm302, %v163, 0.0
    %v313 = vadd.f32 %v311, %v312
    %v314 = vsel %vm302, %v164, 0.0
    %v315 = vadd.f32 %v313, %v314
    %v316 = vsel %vm302, %v165, 0.0
    %v317 = vadd.f32 %v315, %v316
    %v318 = vsel %vm302, %v166, 0.0
    %v319 = vadd.f32 %v317, %v318
    %v320 = vsel %vm302, %v167, 0.0
    %v321 = vadd.f32 %v319, %v320
    %v322 = vsel %vm302, %v168, 0.0
    %v323 = vadd.f32 %v321, %v322
    %v324 = vsel %vm302, %v169, 0.0
    %v325 = vadd.f32 %v323, %v324
    %v326 = vsel %vm302, %v170, 0.0
    %v327 = vadd.f32 %v325, %v326
    %v328 = vsel %vm302, %v171, 0.0
    %v329 = vadd.f32 %v327, %v328
    %v330 = vsel %vm302, %v172, 0.0
    %v331 = vadd.f32 %v329, %v330
    %v332 = vsel %vm302, %v173, 0.0
    %v333 = vadd.f32 %v331, %v332
    %v334 = vmax.f32 %v333, 1.0
    %336 = vset.pattern.permute.xlu0 0
    %337 = vperm.xlu0 %336, %v334
    %v338 = vpop.permute.xlu0 %337
    %v340 = vrcp.pop %v338
    %v341 = vmul.f32 %v301, %v340
    %s342 = smul.u32 0, 16
    %v343 = vlaneseq
    %v344 = vshrl.u32 %v343, 7
    %v345 = vadd.s32 %v344, 8
    %v346 = vstv %s342
    %v347 = vadd.s32 %v344, %v346
    %v348 = vadd.s32 %v345, %v346
    %v349 = vlaneseq
    %v350 = vand.u32 %v349, 127
    %v351 = vmul.u32 %v350, 8
    %vm352 = vcmp.ge.s32.totalorder %v347, %v351
    %vm353 = vcmp.ge.s32.totalorder %v348, %v351
    %v354 = vadd.s32 %v351, 8
    %vm355 = vcmp.lt.s32.totalorder %v347, %v354
    %vm356 = vcmp.lt.s32.totalorder %v348, %v354
    %vm357 = vmand %vm352, %vm355
    %vm358 = vmand %vm353, %vm356
    %v359 = vsel %vm357, 1, 0
    %v360 = vsel %vm358, 1, 0
    %v361 = vcvt.s32.f32 %v359
    %v362 = vcvt.s32.f32 %v360
    %vm363 = vcmask 15360
    %v365 = vsel %vm363, %v361, 0
    %v368 = vsel %vm363, %v362, 0
    %vm370 = vcmask 1041408
    %v372 = vsel %vm370, %v341, 0
    %374 = vmatprep.subr.mxu0 0.0
    %375 = vmatpush1.msra.mxu0 0.0
    %376 = vmatprep.subr.mxu0 0.0
    %377 = vmatpush1.msra.mxu0 0.0
    %378 = vmatprep.subr.mxu0 0.0
    %379 = vmatpush1.msra.mxu0 0.0
    %380 = vmatprep.subr.mxu0 0.0
    %381 = vmatpush1.msra.mxu0 0.0
    %382 = vmatprep.subr.mxu0 0.0
    %383 = vmatpush1.msra.mxu0 0.0
    %384 = vmatprep.subr.mxu0 0.0
    %385 = vmatpush1.msra.mxu0 0.0
    %386 = vmatprep.subr.mxu0 0.0
    %387 = vmatpush1.msra.mxu0 0.0
    %388 = vmatprep.subr.mxu0 0.0
    %389 = vmatpush1.msra.mxu0 0.0
    %390 = vmatprep.subr.mxu0 0.0
    %391 = vmatpush1.msra.mxu0 0.0
    %392 = vmatprep.subr.mxu0 0.0
    %393 = vmatpush1.msra.mxu0 0.0
    %394 = vmatprep.subr.mxu0 0.0
    %395 = vmatpush1.msra.mxu0 0.0
    %396 = vmatprep.subr.mxu0 0.0
    %397 = vmatpush1.msra.mxu0 0.0
    %398 = vmatprep.subr.mxu0 0.0
    %399 = vmatpush1.msra.mxu0 0.0
    %400 = vmatprep.subr.mxu0 0.0
    %401 = vmatpush1.msra.mxu0 0.0
    %402 = vmatprep.subr.mxu0 0.0
    %403 = vmatpush1.msra.mxu0 0.0
    %404 = vmatprep.subr.mxu0 0.0
    %405 = vmatpush1.msra.mxu0 %v372
    %406 = vmatprep.subr.mxu0 0.0
    %407 = vmatpush2.msra.mxu0 0.0
    %408 = vmatprep.subr.mxu0 0.0
    %409 = vmatpush2.msra.mxu0 0.0
    %410 = vmatprep.subr.mxu0 0.0
    %411 = vmatpush2.msra.mxu0 0.0
    %412 = vmatprep.subr.mxu0 0.0
    %413 = vmatpush2.msra.mxu0 0.0
    %414 = vmatprep.subr.mxu0 0.0
    %415 = vmatpush2.msra.mxu0 0.0
    %416 = vmatprep.subr.mxu0 0.0
    %417 = vmatpush2.msra.mxu0 0.0
    %418 = vmatprep.subr.mxu0 0.0
    %419 = vmatpush2.msra.mxu0 0.0
    %420 = vmatprep.subr.mxu0 0.0
    %421 = vmatpush2.msra.mxu0 0.0
    %422 = vmatprep.subr.mxu0 0.0
    %423 = vmatpush2.msra.mxu0 0.0
    %424 = vmatprep.subr.mxu0 0.0
    %425 = vmatpush2.msra.mxu0 0.0
    %426 = vmatprep.subr.mxu0 0.0
    %427 = vmatpush2.msra.mxu0 0.0
    %428 = vmatprep.subr.mxu0 0.0
    %429 = vmatpush2.msra.mxu0 0.0
    %430 = vmatprep.subr.mxu0 0.0
    %431 = vmatpush2.msra.mxu0 0.0
    %432 = vmatprep.subr.mxu0 0.0
    %433 = vmatpush2.msra.mxu0 0.0
    %434 = vmatprep.subr.mxu0 0.0
    %435 = vmatpush2.msra.mxu0 0.0
    %436 = vmatprep.subr.mxu0 0.0
    %437 = vmatpush2.msra.mxu0 0.0
    %438 = vmatprep.mubr.f32.mxu0 0.0
    %439 = vmatmul.mubr.f32.gmra.mxu0 %v365
    %v440 = vpop.f32.mrf.mxu0
    %v441 = vadd.f32 0.0, %v440
    %v442 = vpop.f32.mrf.mxu0
    %443 = vmatprep.mubr.f32.mxu0 0.0
    %444 = vmatmul.mubr.f32.gmra.mxu0 %v368
    %v445 = vpop.f32.mrf.mxu0
    %v446 = vadd.f32 0.0, %v445
    %v447 = vpop.f32.mrf.mxu0
    %448 = vdwg.mxu0
    %v449 = vld [vmem:[%s4] sm:$0xff]
    %v450 = vld [vmem:[%s4 + $0x8] sm:$0xff]
    %451 = vset.pattern.permute.xlu0 0
    %452 = vperm.xlu0 %451, %v449
    %v453 = vpop.permute.xlu0 %452
    %454 = vset.pattern.permute.xlu0 0
    %455 = vperm.xlu0 %454, %v450
    %v456 = vpop.permute.xlu0 %455
    %vm457 = vcmp.eq.s32.totalorder %v350, %v453
    %vm458 = vcmp.eq.s32.totalorder %v350, %v456
    %v459 = vsel %vm457, 1, 0
    %v460 = vsel %vm458, 1, 0
    %v461 = vcvt.s32.f32 %v459
    %v462 = vcvt.s32.f32 %v460
    %v463 = vld [vmem:[#allocation6] sm:$0xff]
    %v464 = vld [vmem:[#allocation6 + $0x8] sm:$0xff]
    %v465 = vld [vmem:[#allocation6 + $0x10] sm:$0xff]
    %v466 = vld [vmem:[#allocation6 + $0x18] sm:$0xff]
    %v467 = vld [vmem:[#allocation6 + $0x20] sm:$0xff]
    %v468 = vld [vmem:[#allocation6 + $0x28] sm:$0xff]
    %v469 = vld [vmem:[#allocation6 + $0x30] sm:$0xff]
    %v470 = vld [vmem:[#allocation6 + $0x38] sm:$0xff]
    %v471 = vld [vmem:[#allocation6 + $0x40] sm:$0xff]
    %v472 = vld [vmem:[#allocation6 + $0x48] sm:$0xff]
    %v473 = vld [vmem:[#allocation6 + $0x50] sm:$0xff]
    %v474 = vld [vmem:[#allocation6 + $0x58] sm:$0xff]
    %vm475 = vcmask 785408
    %v477 = vsel %vm475, %v461, 0
    %v480 = vsel %vm475, %v462, 0
    %482 = vmatprep.subr.mxu0 0.0
    %483 = vmatpush1.msra.mxu0 0.0
    %484 = vmatprep.subr.mxu0 0.0
    %485 = vmatpush1.msra.mxu0 0.0
    %486 = vmatprep.subr.mxu0 0.0
    %487 = vmatpush1.msra.mxu0 0.0
    %488 = vmatprep.subr.mxu0 0.0
    %489 = vmatpush1.msra.mxu0 0.0
    %490 = vmatprep.subr.mxu0 0.0
    %491 = vmatpush1.msra.mxu0 %v474
    %492 = vmatprep.subr.mxu0 0.0
    %493 = vmatpush1.msra.mxu0 %v473
    %494 = vmatprep.subr.mxu0 0.0
    %495 = vmatpush1.msra.mxu0 %v472
    %496 = vmatprep.subr.mxu0 0.0
    %497 = vmatpush1.msra.mxu0 %v471
    %498 = vmatprep.subr.mxu0 0.0
    %499 = vmatpush1.msra.mxu0 %v470
    %500 = vmatprep.subr.mxu0 0.0
    %501 = vmatpush1.msra.mxu0 %v469
    %502 = vmatprep.subr.mxu0 0.0
    %503 = vmatpush1.msra.mxu0 %v468
    %504 = vmatprep.subr.mxu0 0.0
    %505 = vmatpush1.msra.mxu0 %v467
    %506 = vmatprep.subr.mxu0 0.0
    %507 = vmatpush1.msra.mxu0 %v466
    %508 = vmatprep.subr.mxu0 0.0
    %509 = vmatpush1.msra.mxu0 %v465
    %510 = vmatprep.subr.mxu0 0.0
    %511 = vmatpush1.msra.mxu0 %v464
    %512 = vmatprep.subr.mxu0 0.0
    %513 = vmatpush1.msra.mxu0 %v463
    %514 = vmatprep.subr.mxu0 0.0
    %515 = vmatpush2.msra.mxu0 0.0
    %516 = vmatprep.subr.mxu0 0.0
    %517 = vmatpush2.msra.mxu0 0.0
    %518 = vmatprep.subr.mxu0 0.0
    %519 = vmatpush2.msra.mxu0 0.0
    %520 = vmatprep.subr.mxu0 0.0
    %521 = vmatpush2.msra.mxu0 0.0
    %522 = vmatprep.subr.mxu0 0.0
    %523 = vmatpush2.msra.mxu0 0.0
    %524 = vmatprep.subr.mxu0 0.0
    %525 = vmatpush2.msra.mxu0 0.0
    %526 = vmatprep.subr.mxu0 0.0
    %527 = vmatpush2.msra.mxu0 0.0
    %528 = vmatprep.subr.mxu0 0.0
    %529 = vmatpush2.msra.mxu0 0.0
    %530 = vmatprep.subr.mxu0 0.0
    %531 = vmatpush2.msra.mxu0 0.0
    %532 = vmatprep.subr.mxu0 0.0
    %533 = vmatpush2.msra.mxu0 0.0
    %534 = vmatprep.subr.mxu0 0.0
    %535 = vmatpush2.msra.mxu0 0.0
    %536 = vmatprep.subr.mxu0 0.0
    %537 = vmatpush2.msra.mxu0 0.0
    %538 = vmatprep.subr.mxu0 0.0
    %539 = vmatpush2.msra.mxu0 0.0
    %540 = vmatprep.subr.mxu0 0.0
    %541 = vmatpush2.msra.mxu0 0.0
    %542 = vmatprep.subr.mxu0 0.0
    %543 = vmatpush2.msra.mxu0 0.0
    %544 = vmatprep.subr.mxu0 0.0
    %545 = vmatpush2.msra.mxu0 0.0
    %546 = vmatprep.mubr.f32.mxu0 0.0
    %547 = vmatmul.mubr.f32.gmra.mxu0 %v477
    %v548 = vpop.f32.mrf.mxu0
    %v549 = vadd.f32 0.0, %v548
    %v550 = vpop.f32.mrf.mxu0
    %551 = vmatprep.mubr.f32.mxu0 0.0
    %552 = vmatmul.mubr.f32.gmra.mxu0 %v480
    %v553 = vpop.f32.mrf.mxu0
    %v554 = vadd.f32 0.0, %v553
    %v555 = vpop.f32.mrf.mxu0
    %556 = vdwg.mxu0
    %v557 = vld [vmem:[%s5] sm:$0xff]
    %v558 = vld [vmem:[%s5 + $0x8] sm:$0xff]
    %560 = vset.pattern.permute.xlu0 0
    %561 = vperm.xlu0 %560, %v557
    %v562 = vpop.permute.xlu0 %561
    %565 = vset.pattern.permute.xlu0 0
    %566 = vperm.xlu0 %565, %v558
    %v567 = vpop.permute.xlu0 %566
    %v569 = vmul.f32 %v549, %v562
    %v570 = vmul.f32 %v554, %v567
    %v571 = vadd.f32 %v569, %v441
    %v572 = vadd.f32 %v570, %v446
    %v573 = vtanh.pop %v571
    %v574 = vtanh.pop %v572
    %v575 = vpack.c.bf16 %v574, %v573
    %v576 = vld [vmem:[%s6] sm:$0xff]
    %v577 = vld [vmem:[%s6 + $0x8] sm:$0xff]
    %v578 = vld [vmem:[%s6 + $0x10] sm:$0xff]
    %v579 = vld [vmem:[%s6 + $0x18] sm:$0xff]
    %v580 = vld [vmem:[%s6 + $0x20] sm:$0xff]
    %v581 = vld [vmem:[%s6 + $0x28] sm:$0xff]
    %v582 = vld [vmem:[%s6 + $0x30] sm:$0xff]
    %v583 = vld [vmem:[%s6 + $0x38] sm:$0xff]
    %v584 = vld [vmem:[%s7] sm:$0xf]
    %v586 = vlaneseq
    %v587 = vshrl.u32 %v586, 7
    %v588 = vsub.s32 0, %v587
    %v589 = vrot.slane %v584, %v588
    %v590 = vlaneseq
    %v591 = vshrl.u32 %v590, 7
    %v592 = vsub.s32 1, %v591
    %v593 = vrot.slane %v584, %v592
    %v594 = vlaneseq
    %v595 = vshrl.u32 %v594, 7
    %v596 = vsub.s32 2, %v595
    %v597 = vrot.slane %v584, %v596
    %v598 = vlaneseq
    %v599 = vshrl.u32 %v598, 7
    %v600 = vsub.s32 3, %v599
    %v601 = vrot.slane %v584, %v600
    %v614 = vunpack.c.l.b16 %v576
    %v615 = vunpack.c.h.b16 %v576
    %v616 = vunpack.c.l.b16 %v577
    %v617 = vunpack.c.h.b16 %v577
    %v618 = vunpack.c.l.b16 %v578
    %v619 = vunpack.c.h.b16 %v578
    %v620 = vunpack.c.l.b16 %v579
    %v621 = vunpack.c.h.b16 %v579
    %v622 = vunpack.c.l.b16 %v580
    %v623 = vunpack.c.h.b16 %v580
    %v624 = vunpack.c.l.b16 %v581
    %v625 = vunpack.c.h.b16 %v581
    %v626 = vunpack.c.l.b16 %v582
    %v627 = vunpack.c.h.b16 %v582
    %v628 = vunpack.c.l.b16 %v583
    %v629 = vunpack.c.h.b16 %v583
    %v630 = vpack.c.b16 %v618, %v614
    %v631 = vpack.c.b16 %v619, %v615
    %v632 = vpack.c.b16 %v620, %v616
    %v633 = vpack.c.b16 %v621, %v617
    %v634 = vpack.c.b16 %v626, %v622
    %v635 = vpack.c.b16 %v627, %v623
    %v636 = vpack.c.b16 %v628, %v624
    %v637 = vpack.c.b16 %v629, %v625
    %vm646 = vcmask 261120
    %v648 = vsel %vm646, %v575, 0
    %650 = vmatprep.subr.bf16.mxu0 0
    %651 = vmatpush1.bf16.msra.mxu0 0
    %652 = vmatprep.subr.bf16.mxu0 0
    %653 = vmatpush1.bf16.msra.mxu0 0
    %654 = vmatprep.subr.bf16.mxu0 0
    %655 = vmatpush1.bf16.msra.mxu0 0
    %656 = vmatprep.subr.bf16.mxu0 0
    %657 = vmatpush1.bf16.msra.mxu0 0
    %658 = vmatprep.subr.bf16.mxu0 0
    %659 = vmatpush1.bf16.msra.mxu0 0
    %660 = vmatprep.subr.bf16.mxu0 0
    %661 = vmatpush1.bf16.msra.mxu0 0
    %662 = vmatprep.subr.bf16.mxu0 %v635
    %663 = vmatpush1.bf16.msra.mxu0 %v634
    %664 = vmatprep.subr.bf16.mxu0 %v631
    %665 = vmatpush1.bf16.msra.mxu0 %v630
    %666 = vmatprep.subr.bf16.mxu0 0
    %667 = vmatpush2.bf16.msra.mxu0 0
    %668 = vmatprep.subr.bf16.mxu0 0
    %669 = vmatpush2.bf16.msra.mxu0 0
    %670 = vmatprep.subr.bf16.mxu0 0
    %671 = vmatpush2.bf16.msra.mxu0 0
    %672 = vmatprep.subr.bf16.mxu0 0
    %673 = vmatpush2.bf16.msra.mxu0 0
    %674 = vmatprep.subr.bf16.mxu0 0
    %675 = vmatpush2.bf16.msra.mxu0 0
    %676 = vmatprep.subr.bf16.mxu0 0
    %677 = vmatpush2.bf16.msra.mxu0 0
    %678 = vmatprep.subr.bf16.mxu0 0
    %679 = vmatpush2.bf16.msra.mxu0 0
    %680 = vmatprep.subr.bf16.mxu0 0
    %681 = vmatpush2.bf16.msra.mxu0 0
    %682 = vmatprep.mubr.bf16.mxu0 0
    %683 = vmatmul.mubr.bf16.gmra.mxu0 %v648
    %v684 = vpop.f32.mrf.mxu0
    %v685 = vadd.f32 %v589, %v684
    %v686 = vpop.f32.mrf.mxu0
    %v687 = vadd.f32 %v593, %v686
    %v688 = vpop.f32.mrf.mxu0
    %v689 = vadd.f32 %v589, %v688
    %v690 = vpop.f32.mrf.mxu0
    %v691 = vadd.f32 %v593, %v690
    %692 = vdwg.mxu0
    %693 = vmatprep.subr.bf16.mxu0 0
    %694 = vmatpush1.bf16.msra.mxu0 0
    %695 = vmatprep.subr.bf16.mxu0 0
    %696 = vmatpush1.bf16.msra.mxu0 0
    %697 = vmatprep.subr.bf16.mxu0 0
    %698 = vmatpush1.bf16.msra.mxu0 0
    %699 = vmatprep.subr.bf16.mxu0 0
    %700 = vmatpush1.bf16.msra.mxu0 0
    %701 = vmatprep.subr.bf16.mxu0 0
    %702 = vmatpush1.bf16.msra.mxu0 0
    %703 = vmatprep.subr.bf16.mxu0 0
    %704 = vmatpush1.bf16.msra.mxu0 0
    %705 = vmatprep.subr.bf16.mxu0 %v637
    %706 = vmatpush1.bf16.msra.mxu0 %v636
    %707 = vmatprep.subr.bf16.mxu0 %v633
    %708 = vmatpush1.bf16.msra.mxu0 %v632
    %709 = vmatprep.subr.bf16.mxu0 0
    %710 = vmatpush2.bf16.msra.mxu0 0
    %711 = vmatprep.subr.bf16.mxu0 0
    %712 = vmatpush2.bf16.msra.mxu0 0
    %713 = vmatprep.subr.bf16.mxu0 0
    %714 = vmatpush2.bf16.msra.mxu0 0
    %715 = vmatprep.subr.bf16.mxu0 0
    %716 = vmatpush2.bf16.msra.mxu0 0
    %717 = vmatprep.subr.bf16.mxu0 0
    %718 = vmatpush2.bf16.msra.mxu0 0
    %719 = vmatprep.subr.bf16.mxu0 0
    %720 = vmatpush2.bf16.msra.mxu0 0
    %721 = vmatprep.subr.bf16.mxu0 0
    %722 = vmatpush2.bf16.msra.mxu0 0
    %723 = vmatprep.subr.bf16.mxu0 0
    %724 = vmatpush2.bf16.msra.mxu0 0
    %725 = vmatprep.mubr.bf16.mxu0 0
    %726 = vmatmul.mubr.bf16.gmra.mxu0 %v648
    %v727 = vpop.f32.mrf.mxu0
    %v728 = vadd.f32 %v597, %v727
    %v729 = vpop.f32.mrf.mxu0
    %v730 = vadd.f32 %v601, %v729
    %v731 = vpop.f32.mrf.mxu0
    %v732 = vadd.f32 %v597, %v731
    %v733 = vpop.f32.mrf.mxu0
    %v734 = vadd.f32 %v601, %v733
    %735 = vdwg.mxu0
    %v736 = vmax.f32 %v685, 0.0
    %v737 = vmax.f32 %v687, 0.0
    %v738 = vmax.f32 %v728, 0.0
    %v739 = vmax.f32 %v730, 0.0
    %v740 = vmax.f32 %v689, 0.0
    %v741 = vmax.f32 %v691, 0.0
    %v742 = vmax.f32 %v732, 0.0
    %v743 = vmax.f32 %v734, 0.0
    %v744 = vpack.c.bf16 %v740, %v736
    %v745 = vpack.c.bf16 %v741, %v737
    %v746 = vpack.c.bf16 %v742, %v738
    %v747 = vpack.c.bf16 %v743, %v739
    %v748 = vld [vmem:[#allocation7] sm:$0xff]
    %v749 = vld [vmem:[#allocation7 + $0x8] sm:$0xff]
    %v750 = vld [vmem:[#allocation7 + $0x10] sm:$0xff]
    %v751 = vld [vmem:[#allocation7 + $0x18] sm:$0xff]
    %v752 = vld [vmem:[#allocation7 + $0x20] sm:$0xff]
    %v753 = vld [vmem:[#allocation7 + $0x28] sm:$0xff]
    %v754 = vld [vmem:[#allocation7 + $0x30] sm:$0xff]
    %v755 = vld [vmem:[#allocation7 + $0x38] sm:$0xff]
    %v756 = vld [vmem:[#allocation7 + $0x40] sm:$0xff]
    %v757 = vld [vmem:[#allocation7 + $0x48] sm:$0xff]
    %v758 = vld [vmem:[#allocation7 + $0x50] sm:$0xff]
    %v759 = vld [vmem:[#allocation7 + $0x58] sm:$0xff]
    %v760 = vld [vmem:[#allocation7 + $0x60] sm:$0xff]
    %v761 = vld [vmem:[#allocation7 + $0x68] sm:$0xff]
    %v762 = vld [vmem:[#allocation7 + $0x70] sm:$0xff]
    %v763 = vld [vmem:[#allocation7 + $0x78] sm:$0xff]
    %v764 = vld [vmem:[#allocation7 + $0x80] sm:$0xff]
    %v765 = vld [vmem:[#allocation7 + $0x88] sm:$0xff]
    %v766 = vld [vmem:[#allocation7 + $0x90] sm:$0xff]
    %v767 = vld [vmem:[#allocation7 + $0x98] sm:$0xff]
    %v768 = vld [vmem:[#allocation7 + $0xa0] sm:$0xff]
    %v769 = vld [vmem:[#allocation7 + $0xa8] sm:$0xff]
    %v770 = vld [vmem:[#allocation7 + $0xb0] sm:$0xff]
    %v771 = vld [vmem:[#allocation7 + $0xb8] sm:$0xff]
    %v772 = vld [vmem:[#allocation7 + $0xc0] sm:$0xff]
    %v773 = vld [vmem:[#allocation7 + $0xc8] sm:$0xff]
    %v774 = vld [vmem:[#allocation7 + $0xd0] sm:$0xff]
    %v775 = vld [vmem:[#allocation7 + $0xd8] sm:$0xff]
    %v776 = vld [vmem:[#allocation7 + $0xe0] sm:$0xff]
    %v777 = vld [vmem:[#allocation7 + $0xe8] sm:$0xff]
    %v778 = vld [vmem:[#allocation7 + $0xf0] sm:$0xff]
    %v779 = vld [vmem:[#allocation7 + $0xf8] sm:$0xff]
    %v780 = vld [vmem:[#allocation7 + $0x100] sm:$0xff]
    %v781 = vld [vmem:[#allocation7 + $0x108] sm:$0xff]
    %v782 = vld [vmem:[#allocation7 + $0x110] sm:$0xff]
    %v783 = vld [vmem:[#allocation7 + $0x118] sm:$0xff]
    %v784 = vld [vmem:[#allocation7 + $0x120] sm:$0xff]
    %v785 = vld [vmem:[#allocation7 + $0x128] sm:$0xff]
    %v786 = vld [vmem:[#allocation7 + $0x130] sm:$0xff]
    %v787 = vld [vmem:[#allocation7 + $0x138] sm:$0xff]
    %v788 = vld [vmem:[#allocation7 + $0x140] sm:$0xff]
    %v789 = vld [vmem:[#allocation7 + $0x148] sm:$0xff]
    %v790 = vld [vmem:[#allocation7 + $0x150] sm:$0xff]
    %v791 = vld [vmem:[#allocation7 + $0x158] sm:$0xff]
    %v792 = vld [vmem:[#allocation7 + $0x160] sm:$0xff]
    %v793 = vld [vmem:[#allocation7 + $0x168] sm:$0xff]
    %v794 = vld [vmem:[#allocation7 + $0x170] sm:$0xff]
    %v795 = vld [vmem:[#allocation7 + $0x178] sm:$0xff]
    %v796 = vld [vmem:[#allocation7 + $0x180] sm:$0xff]
    %v797 = vld [vmem:[#allocation7 + $0x188] sm:$0xff]
    %v798 = vld [vmem:[#allocation7 + $0x190] sm:$0xff]
    %v799 = vld [vmem:[#allocation7 + $0x198] sm:$0xff]
    %v800 = vld [vmem:[#allocation7 + $0x1a0] sm:$0xff]
    %v801 = vld [vmem:[#allocation7 + $0x1a8] sm:$0xff]
    %v802 = vld [vmem:[#allocation7 + $0x1b0] sm:$0xff]
    %v803 = vld [vmem:[#allocation7 + $0x1b8] sm:$0xff]
    %v804 = vld [vmem:[#allocation7 + $0x1c0] sm:$0xff]
    %v805 = vld [vmem:[#allocation7 + $0x1c8] sm:$0xff]
    %v806 = vld [vmem:[#allocation7 + $0x1d0] sm:$0xff]
    %v807 = vld [vmem:[#allocation7 + $0x1d8] sm:$0xff]
    %v808 = vld [vmem:[#allocation7 + $0x1e0] sm:$0xff]
    %v809 = vld [vmem:[#allocation7 + $0x1e8] sm:$0xff]
    %v810 = vld [vmem:[#allocation7 + $0x1f0] sm:$0xff]
    %v811 = vld [vmem:[#allocation7 + $0x1f8] sm:$0xff]
    %v812 = vld [vmem:[#allocation7 + $0x200] sm:$0xff]
    %v813 = vld [vmem:[#allocation7 + $0x208] sm:$0xff]
    %v814 = vld [vmem:[#allocation7 + $0x210] sm:$0xff]
    %v815 = vld [vmem:[#allocation7 + $0x218] sm:$0xff]
    %v816 = vld [vmem:[#allocation7 + $0x220] sm:$0xff]
    %v817 = vld [vmem:[#allocation7 + $0x228] sm:$0xff]
    %v818 = vld [vmem:[#allocation7 + $0x230] sm:$0xff]
    %v819 = vld [vmem:[#allocation7 + $0x238] sm:$0xff]
    %v820 = vld [vmem:[#allocation7 + $0x240] sm:$0xff]
    %v821 = vld [vmem:[#allocation7 + $0x248] sm:$0xff]
    %v822 = vld [vmem:[#allocation7 + $0x250] sm:$0xff]
    %v823 = vld [vmem:[#allocation7 + $0x258] sm:$0xff]
    %v824 = vld [vmem:[#allocation7 + $0x260] sm:$0xff]
    %v825 = vld [vmem:[#allocation7 + $0x268] sm:$0xff]
    %v826 = vld [vmem:[#allocation7 + $0x270] sm:$0xff]
    %v827 = vld [vmem:[#allocation7 + $0x278] sm:$0xff]
    %v828 = vld [vmem:[#allocation7 + $0x280] sm:$0xff]
    %v829 = vld [vmem:[#allocation7 + $0x288] sm:$0xff]
    %v830 = vld [vmem:[#allocation7 + $0x290] sm:$0xff]
    %v831 = vld [vmem:[#allocation7 + $0x298] sm:$0xff]
    %v832 = vld [vmem:[#allocation7 + $0x2a0] sm:$0xff]
    %v833 = vld [vmem:[#allocation7 + $0x2a8] sm:$0xff]
    %v834 = vld [vmem:[#allocation7 + $0x2b0] sm:$0xff]
    %v835 = vld [vmem:[#allocation7 + $0x2b8] sm:$0xff]
    %v836 = vld [vmem:[#allocation7 + $0x2c0] sm:$0xff]
    %v837 = vld [vmem:[#allocation7 + $0x2c8] sm:$0xff]
    %v838 = vld [vmem:[#allocation7 + $0x2d0] sm:$0xff]
    %v839 = vld [vmem:[#allocation7 + $0x2d8] sm:$0xff]
    %v840 = vld [vmem:[#allocation7 + $0x2e0] sm:$0xff]
    %v841 = vld [vmem:[#allocation7 + $0x2e8] sm:$0xff]
    %v842 = vld [vmem:[#allocation7 + $0x2f0] sm:$0xff]
    %v843 = vld [vmem:[#allocation7 + $0x2f8] sm:$0xff]
    %v844 = vld [vmem:[#allocation7 + $0x300] sm:$0xff]
    %v845 = vld [vmem:[#allocation7 + $0x308] sm:$0xff]
    %v846 = vld [vmem:[#allocation7 + $0x310] sm:$0xff]
    %v847 = vld [vmem:[#allocation7 + $0x318] sm:$0xff]
    %v848 = vld [vmem:[#allocation7 + $0x320] sm:$0xff]
    %v849 = vld [vmem:[#allocation7 + $0x328] sm:$0xff]
    %v850 = vld [vmem:[#allocation7 + $0x330] sm:$0xff]
    %v851 = vld [vmem:[#allocation7 + $0x338] sm:$0xff]
    %v852 = vld [vmem:[#allocation7 + $0x340] sm:$0xff]
    %v853 = vld [vmem:[#allocation7 + $0x348] sm:$0xff]
    %v854 = vld [vmem:[#allocation7 + $0x350] sm:$0xff]
    %v855 = vld [vmem:[#allocation7 + $0x358] sm:$0xff]
    %v856 = vld [vmem:[#allocation7 + $0x360] sm:$0xff]
    %v857 = vld [vmem:[#allocation7 + $0x368] sm:$0xff]
    %v858 = vld [vmem:[#allocation7 + $0x370] sm:$0xff]
    %v859 = vld [vmem:[#allocation7 + $0x378] sm:$0xff]
    %v860 = vld [vmem:[#allocation7 + $0x380] sm:$0xff]
    %v861 = vld [vmem:[#allocation7 + $0x388] sm:$0xff]
    %v862 = vld [vmem:[#allocation7 + $0x390] sm:$0xff]
    %v863 = vld [vmem:[#allocation7 + $0x398] sm:$0xff]
    %v864 = vld [vmem:[#allocation7 + $0x3a0] sm:$0xff]
    %v865 = vld [vmem:[#allocation7 + $0x3a8] sm:$0xff]
    %v866 = vld [vmem:[#allocation7 + $0x3b0] sm:$0xff]
    %v867 = vld [vmem:[#allocation7 + $0x3b8] sm:$0xff]
    %v868 = vld [vmem:[#allocation7 + $0x3c0] sm:$0xff]
    %v869 = vld [vmem:[#allocation7 + $0x3c8] sm:$0xff]
    %v870 = vld [vmem:[#allocation7 + $0x3d0] sm:$0xff]
    %v871 = vld [vmem:[#allocation7 + $0x3d8] sm:$0xff]
    %v872 = vld [vmem:[#allocation7 + $0x3e0] sm:$0xff]
    %v873 = vld [vmem:[#allocation7 + $0x3e8] sm:$0xff]
    %v874 = vld [vmem:[#allocation7 + $0x3f0] sm:$0xff]
    %v875 = vld [vmem:[#allocation7 + $0x3f8] sm:$0xff]
    %v876 = vld [vmem:[%s9] sm:$0xf]
    %v878 = vlaneseq
    %v879 = vshrl.u32 %v878, 7
    %v880 = vsub.s32 0, %v879
    %v881 = vrot.slane %v876, %v880
    %v882 = vlaneseq
    %v883 = vshrl.u32 %v882, 7
    %v884 = vsub.s32 1, %v883
    %v885 = vrot.slane %v876, %v884
    %v886 = vlaneseq
    %v887 = vshrl.u32 %v886, 7
    %v888 = vsub.s32 2, %v887
    %v889 = vrot.slane %v876, %v888
    %v890 = vlaneseq
    %v891 = vshrl.u32 %v890, 7
    %v892 = vsub.s32 3, %v891
    %v893 = vrot.slane %v876, %v892
    %v1026 = vunpack.c.l.b16 %v748
    %v1027 = vunpack.c.h.b16 %v748
    %v1028 = vunpack.c.l.b16 %v749
    %v1029 = vunpack.c.h.b16 %v749
    %v1030 = vunpack.c.l.b16 %v750
    %v1031 = vunpack.c.h.b16 %v750
    %v1032 = vunpack.c.l.b16 %v751
    %v1033 = vunpack.c.h.b16 %v751
    %v1034 = vunpack.c.l.b16 %v752
    %v1035 = vunpack.c.h.b16 %v752
    %v1036 = vunpack.c.l.b16 %v753
    %v1037 = vunpack.c.h.b16 %v753
    %v1038 = vunpack.c.l.b16 %v754
    %v1039 = vunpack.c.h.b16 %v754
    %v1040 = vunpack.c.l.b16 %v755
    %v1041 = vunpack.c.h.b16 %v755
    %v1042 = vunpack.c.l.b16 %v756
    %v1043 = vunpack.c.h.b16 %v756
    %v1044 = vunpack.c.l.b16 %v757
    %v1045 = vunpack.c.h.b16 %v757
    %v1046 = vunpack.c.l.b16 %v758
    %v1047 = vunpack.c.h.b16 %v758
    %v1048 = vunpack.c.l.b16 %v759
    %v1049 = vunpack.c.h.b16 %v759
    %v1050 = vunpack.c.l.b16 %v760
    %v1051 = vunpack.c.h.b16 %v760
    %v1052 = vunpack.c.l.b16 %v761
    %v1053 = vunpack.c.h.b16 %v761
    %v1054 = vunpack.c.l.b16 %v762
    %v1055 = vunpack.c.h.b16 %v762
    %v1056 = vunpack.c.l.b16 %v763
    %v1057 = vunpack.c.h.b16 %v763
    %v1058 = vunpack.c.l.b16 %v764
    %v1059 = vunpack.c.h.b16 %v764
    %v1060 = vunpack.c.l.b16 %v765
    %v1061 = vunpack.c.h.b16 %v765
    %v1062 = vunpack.c.l.b16 %v766
    %v1063 = vunpack.c.h.b16 %v766
    %v1064 = vunpack.c.l.b16 %v767
    %v1065 = vunpack.c.h.b16 %v767
    %v1066 = vunpack.c.l.b16 %v768
    %v1067 = vunpack.c.h.b16 %v768
    %v1068 = vunpack.c.l.b16 %v769
    %v1069 = vunpack.c.h.b16 %v769
    %v1070 = vunpack.c.l.b16 %v770
    %v1071 = vunpack.c.h.b16 %v770
    %v1072 = vunpack.c.l.b16 %v771
    %v1073 = vunpack.c.h.b16 %v771
    %v1074 = vunpack.c.l.b16 %v772
    %v1075 = vunpack.c.h.b16 %v772
    %v1076 = vunpack.c.l.b16 %v773
    %v1077 = vunpack.c.h.b16 %v773
    %v1078 = vunpack.c.l.b16 %v774
    %v1079 = vunpack.c.h.b16 %v774
    %v1080 = vunpack.c.l.b16 %v775
    %v1081 = vunpack.c.h.b16 %v775
    %v1082 = vunpack.c.l.b16 %v776
    %v1083 = vunpack.c.h.b16 %v776
    %v1084 = vunpack.c.l.b16 %v777
    %v1085 = vunpack.c.h.b16 %v777
    %v1086 = vunpack.c.l.b16 %v778
    %v1087 = vunpack.c.h.b16 %v778
    %v1088 = vunpack.c.l.b16 %v779
    %v1089 = vunpack.c.h.b16 %v779
    %v1090 = vunpack.c.l.b16 %v780
    %v1091 = vunpack.c.h.b16 %v780
    %v1092 = vunpack.c.l.b16 %v781
    %v1093 = vunpack.c.h.b16 %v781
    %v1094 = vunpack.c.l.b16 %v782
    %v1095 = vunpack.c.h.b16 %v782
    %v1096 = vunpack.c.l.b16 %v783
    %v1097 = vunpack.c.h.b16 %v783
    %v1098 = vunpack.c.l.b16 %v784
    %v1099 = vunpack.c.h.b16 %v784
    %v1100 = vunpack.c.l.b16 %v785
    %v1101 = vunpack.c.h.b16 %v785
    %v1102 = vunpack.c.l.b16 %v786
    %v1103 = vunpack.c.h.b16 %v786
    %v1104 = vunpack.c.l.b16 %v787
    %v1105 = vunpack.c.h.b16 %v787
    %v1106 = vunpack.c.l.b16 %v788
    %v1107 = vunpack.c.h.b16 %v788
    %v1108 = vunpack.c.l.b16 %v789
    %v1109 = vunpack.c.h.b16 %v789
    %v1110 = vunpack.c.l.b16 %v790
    %v1111 = vunpack.c.h.b16 %v790
    %v1112 = vunpack.c.l.b16 %v791
    %v1113 = vunpack.c.h.b16 %v791
    %v1114 = vunpack.c.l.b16 %v792
    %v1115 = vunpack.c.h.b16 %v792
    %v1116 = vunpack.c.l.b16 %v793
    %v1117 = vunpack.c.h.b16 %v793
    %v1118 = vunpack.c.l.b16 %v794
    %v1119 = vunpack.c.h.b16 %v794
    %v1120 = vunpack.c.l.b16 %v795
    %v1121 = vunpack.c.h.b16 %v795
    %v1122 = vunpack.c.l.b16 %v796
    %v1123 = vunpack.c.h.b16 %v796
    %v1124 = vunpack.c.l.b16 %v797
    %v1125 = vunpack.c.h.b16 %v797
    %v1126 = vunpack.c.l.b16 %v798
    %v1127 = vunpack.c.h.b16 %v798
    %v1128 = vunpack.c.l.b16 %v799
    %v1129 = vunpack.c.h.b16 %v799
    %v1130 = vunpack.c.l.b16 %v800
    %v1131 = vunpack.c.h.b16 %v800
    %v1132 = vunpack.c.l.b16 %v801
    %v1133 = vunpack.c.h.b16 %v801
    %v1134 = vunpack.c.l.b16 %v802
    %v1135 = vunpack.c.h.b16 %v802
    %v1136 = vunpack.c.l.b16 %v803
    %v1137 = vunpack.c.h.b16 %v803
    %v1138 = vunpack.c.l.b16 %v804
    %v1139 = vunpack.c.h.b16 %v804
    %v1140 = vunpack.c.l.b16 %v805
    %v1141 = vunpack.c.h.b16 %v805
    %v1142 = vunpack.c.l.b16 %v806
    %v1143 = vunpack.c.h.b16 %v806
    %v1144 = vunpack.c.l.b16 %v807
    %v1145 = vunpack.c.h.b16 %v807
    %v1146 = vunpack.c.l.b16 %v808
    %v1147 = vunpack.c.h.b16 %v808
    %v1148 = vunpack.c.l.b16 %v809
    %v1149 = vunpack.c.h.b16 %v809
    %v1150 = vunpack.c.l.b16 %v810
    %v1151 = vunpack.c.h.b16 %v810
    %v1152 = vunpack.c.l.b16 %v811
    %v1153 = vunpack.c.h.b16 %v811
    %v1154 = vunpack.c.l.b16 %v812
    %v1155 = vunpack.c.h.b16 %v812
    %v1156 = vunpack.c.l.b16 %v813
    %v1157 = vunpack.c.h.b16 %v813
    %v1158 = vunpack.c.l.b16 %v814
    %v1159 = vunpack.c.h.b16 %v814
    %v1160 = vunpack.c.l.b16 %v815
    %v1161 = vunpack.c.h.b16 %v815
    %v1162 = vunpack.c.l.b16 %v816
    %v1163 = vunpack.c.h.b16 %v816
    %v1164 = vunpack.c.l.b16 %v817
    %v1165 = vunpack.c.h.b16 %v817
    %v1166 = vunpack.c.l.b16 %v818
    %v1167 = vunpack.c.h.b16 %v818
    %v1168 = vunpack.c.l.b16 %v819
    %v1169 = vunpack.c.h.b16 %v819
    %v1170 = vunpack.c.l.b16 %v820
    %v1171 = vunpack.c.h.b16 %v820
    %v1172 = vunpack.c.l.b16 %v821
    %v1173 = vunpack.c.h.b16 %v821
    %v1174 = vunpack.c.l.b16 %v822
    %v1175 = vunpack.c.h.b16 %v822
    %v1176 = vunpack.c.l.b16 %v823
    %v1177 = vunpack.c.h.b16 %v823
    %v1178 = vunpack.c.l.b16 %v824
    %v1179 = vunpack.c.h.b16 %v824
    %v1180 = vunpack.c.l.b16 %v825
    %v1181 = vunpack.c.h.b16 %v825
    %v1182 = vunpack.c.l.b16 %v826
    %v1183 = vunpack.c.h.b16 %v826
    %v1184 = vunpack.c.l.b16 %v827
    %v1185 = vunpack.c.h.b16 %v827
    %v1186 = vunpack.c.l.b16 %v828
    %v1187 = vunpack.c.h.b16 %v828
    %v1188 = vunpack.c.l.b16 %v829
    %v1189 = vunpack.c.h.b16 %v829
    %v1190 = vunpack.c.l.b16 %v830
    %v1191 = vunpack.c.h.b16 %v830
    %v1192 = vunpack.c.l.b16 %v831
    %v1193 = vunpack.c.h.b16 %v831
    %v1194 = vunpack.c.l.b16 %v832
    %v1195 = vunpack.c.h.b16 %v832
    %v1196 = vunpack.c.l.b16 %v833
    %v1197 = vunpack.c.h.b16 %v833
    %v1198 = vunpack.c.l.b16 %v834
    %v1199 = vunpack.c.h.b16 %v834
    %v1200 = vunpack.c.l.b16 %v835
    %v1201 = vunpack.c.h.b16 %v835
    %v1202 = vunpack.c.l.b16 %v836
    %v1203 = vunpack.c.h.b16 %v836
    %v1204 = vunpack.c.l.b16 %v837
    %v1205 = vunpack.c.h.b16 %v837
    %v1206 = vunpack.c.l.b16 %v838
    %v1207 = vunpack.c.h.b16 %v838
    %v1208 = vunpack.c.l.b16 %v839
    %v1209 = vunpack.c.h.b16 %v839
    %v1210 = vunpack.c.l.b16 %v840
    %v1211 = vunpack.c.h.b16 %v840
    %v1212 = vunpack.c.l.b16 %v841
    %v1213 = vunpack.c.h.b16 %v841
    %v1214 = vunpack.c.l.b16 %v842
    %v1215 = vunpack.c.h.b16 %v842
    %v1216 = vunpack.c.l.b16 %v843
    %v1217 = vunpack.c.h.b16 %v843
    %v1218 = vunpack.c.l.b16 %v844
    %v1219 = vunpack.c.h.b16 %v844
    %v1220 = vunpack.c.l.b16 %v845
    %v1221 = vunpack.c.h.b16 %v845
    %v1222 = vunpack.c.l.b16 %v846
    %v1223 = vunpack.c.h.b16 %v846
    %v1224 = vunpack.c.l.b16 %v847
    %v1225 = vunpack.c.h.b16 %v847
    %v1226 = vunpack.c.l.b16 %v848
    %v1227 = vunpack.c.h.b16 %v848
    %v1228 = vunpack.c.l.b16 %v849
    %v1229 = vunpack.c.h.b16 %v849
    %v1230 = vunpack.c.l.b16 %v850
    %v1231 = vunpack.c.h.b16 %v850
    %v1232 = vunpack.c.l.b16 %v851
    %v1233 = vunpack.c.h.b16 %v851
    %v1234 = vunpack.c.l.b16 %v852
    %v1235 = vunpack.c.h.b16 %v852
    %v1236 = vunpack.c.l.b16 %v853
    %v1237 = vunpack.c.h.b16 %v853
    %v1238 = vunpack.c.l.b16 %v854
    %v1239 = vunpack.c.h.b16 %v854
    %v1240 = vunpack.c.l.b16 %v855
    %v1241 = vunpack.c.h.b16 %v855
    %v1242 = vunpack.c.l.b16 %v856
    %v1243 = vunpack.c.h.b16 %v856
    %v1244 = vunpack.c.l.b16 %v857
    %v1245 = vunpack.c.h.b16 %v857
    %v1246 = vunpack.c.l.b16 %v858
    %v1247 = vunpack.c.h.b16 %v858
    %v1248 = vunpack.c.l.b16 %v859
    %v1249 = vunpack.c.h.b16 %v859
    %v1250 = vunpack.c.l.b16 %v860
    %v1251 = vunpack.c.h.b16 %v860
    %v1252 = vunpack.c.l.b16 %v861
    %v1253 = vunpack.c.h.b16 %v861
    %v1254 = vunpack.c.l.b16 %v862
    %v1255 = vunpack.c.h.b16 %v862
    %v1256 = vunpack.c.l.b16 %v863
    %v1257 = vunpack.c.h.b16 %v863
    %v1258 = vunpack.c.l.b16 %v864
    %v1259 = vunpack.c.h.b16 %v864
    %v1260 = vunpack.c.l.b16 %v865
    %v1261 = vunpack.c.h.b16 %v865
    %v1262 = vunpack.c.l.b16 %v866
    %v1263 = vunpack.c.h.b16 %v866
    %v1264 = vunpack.c.l.b16 %v867
    %v1265 = vunpack.c.h.b16 %v867
    %v1266 = vunpack.c.l.b16 %v868
    %v1267 = vunpack.c.h.b16 %v868
    %v1268 = vunpack.c.l.b16 %v869
    %v1269 = vunpack.c.h.b16 %v869
    %v1270 = vunpack.c.l.b16 %v870
    %v1271 = vunpack.c.h.b16 %v870
    %v1272 = vunpack.c.l.b16 %v871
    %v1273 = vunpack.c.h.b16 %v871
    %v1274 = vunpack.c.l.b16 %v872
    %v1275 = vunpack.c.h.b16 %v872
    %v1276 = vunpack.c.l.b16 %v873
    %v1277 = vunpack.c.h.b16 %v873
    %v1278 = vunpack.c.l.b16 %v874
    %v1279 = vunpack.c.h.b16 %v874
    %v1280 = vunpack.c.l.b16 %v875
    %v1281 = vunpack.c.h.b16 %v875
    %v1282 = vpack.c.b16 %v1030, %v1026
    %v1283 = vpack.c.b16 %v1031, %v1027
    %v1284 = vpack.c.b16 %v1032, %v1028
    %v1285 = vpack.c.b16 %v1033, %v1029
    %v1286 = vpack.c.b16 %v1038, %v1034
    %v1287 = vpack.c.b16 %v1039, %v1035
    %v1288 = vpack.c.b16 %v1040, %v1036
    %v1289 = vpack.c.b16 %v1041, %v1037
    %v1290 = vpack.c.b16 %v1046, %v1042
    %v1291 = vpack.c.b16 %v1047, %v1043
    %v1292 = vpack.c.b16 %v1048, %v1044
    %v1293 = vpack.c.b16 %v1049, %v1045
    %v1294 = vpack.c.b16 %v1054, %v1050
    %v1295 = vpack.c.b16 %v1055, %v1051
    %v1296 = vpack.c.b16 %v1056, %v1052
    %v1297 = vpack.c.b16 %v1057, %v1053
    %v1298 = vpack.c.b16 %v1062, %v1058
    %v1299 = vpack.c.b16 %v1063, %v1059
    %v1300 = vpack.c.b16 %v1064, %v1060
    %v1301 = vpack.c.b16 %v1065, %v1061
    %v1302 = vpack.c.b16 %v1070, %v1066
    %v1303 = vpack.c.b16 %v1071, %v1067
    %v1304 = vpack.c.b16 %v1072, %v1068
    %v1305 = vpack.c.b16 %v1073, %v1069
    %v1306 = vpack.c.b16 %v1078, %v1074
    %v1307 = vpack.c.b16 %v1079, %v1075
    %v1308 = vpack.c.b16 %v1080, %v1076
    %v1309 = vpack.c.b16 %v1081, %v1077
    %v1310 = vpack.c.b16 %v1086, %v1082
    %v1311 = vpack.c.b16 %v1087, %v1083
    %v1312 = vpack.c.b16 %v1088, %v1084
    %v1313 = vpack.c.b16 %v1089, %v1085
    %v1314 = vpack.c.b16 %v1094, %v1090
    %v1315 = vpack.c.b16 %v1095, %v1091
    %v1316 = vpack.c.b16 %v1096, %v1092
    %v1317 = vpack.c.b16 %v1097, %v1093
    %v1318 = vpack.c.b16 %v1102, %v1098
    %v1319 = vpack.c.b16 %v1103, %v1099
    %v1320 = vpack.c.b16 %v1104, %v1100
    %v1321 = vpack.c.b16 %v1105, %v1101
    %v1322 = vpack.c.b16 %v1110, %v1106
    %v1323 = vpack.c.b16 %v1111, %v1107
    %v1324 = vpack.c.b16 %v1112, %v1108
    %v1325 = vpack.c.b16 %v1113, %v1109
    %v1326 = vpack.c.b16 %v1118, %v1114
    %v1327 = vpack.c.b16 %v1119, %v1115
    %v1328 = vpack.c.b16 %v1120, %v1116
    %v1329 = vpack.c.b16 %v1121, %v1117
    %v1330 = vpack.c.b16 %v1126, %v1122
    %v1331 = vpack.c.b16 %v1127, %v1123
    %v1332 = vpack.c.b16 %v1128, %v1124
    %v1333 = vpack.c.b16 %v1129, %v1125
    %v1334 = vpack.c.b16 %v1134, %v1130
    %v1335 = vpack.c.b16 %v1135, %v1131
    %v1336 = vpack.c.b16 %v1136, %v1132
    %v1337 = vpack.c.b16 %v1137, %v1133
    %v1338 = vpack.c.b16 %v1142, %v1138
    %v1339 = vpack.c.b16 %v1143, %v1139
    %v1340 = vpack.c.b16 %v1144, %v1140
    %v1341 = vpack.c.b16 %v1145, %v1141
    %v1342 = vpack.c.b16 %v1150, %v1146
    %v1343 = vpack.c.b16 %v1151, %v1147
    %v1344 = vpack.c.b16 %v1152, %v1148
    %v1345 = vpack.c.b16 %v1153, %v1149
    %v1346 = vpack.c.b16 %v1158, %v1154
    %v1347 = vpack.c.b16 %v1159, %v1155
    %v1348 = vpack.c.b16 %v1160, %v1156
    %v1349 = vpack.c.b16 %v1161, %v1157
    %v1350 = vpack.c.b16 %v1166, %v1162
    %v1351 = vpack.c.b16 %v1167, %v1163
    %v1352 = vpack.c.b16 %v1168, %v1164
    %v1353 = vpack.c.b16 %v1169, %v1165
    %v1354 = vpack.c.b16 %v1174, %v1170
    %v1355 = vpack.c.b16 %v1175, %v1171
    %v1356 = vpack.c.b16 %v1176, %v1172
    %v1357 = vpack.c.b16 %v1177, %v1173
    %v1358 = vpack.c.b16 %v1182, %v1178
    %v1359 = vpack.c.b16 %v1183, %v1179
    %v1360 = vpack.c.b16 %v1184, %v1180
    %v1361 = vpack.c.b16 %v1185, %v1181
    %v1362 = vpack.c.b16 %v1190, %v1186
    %v1363 = vpack.c.b16 %v1191, %v1187
    %v1364 = vpack.c.b16 %v1192, %v1188
    %v1365 = vpack.c.b16 %v1193, %v1189
    %v1366 = vpack.c.b16 %v1198, %v1194
    %v1367 = vpack.c.b16 %v1199, %v1195
    %v1368 = vpack.c.b16 %v1200, %v1196
    %v1369 = vpack.c.b16 %v1201, %v1197
    %v1370 = vpack.c.b16 %v1206, %v1202
    %v1371 = vpack.c.b16 %v1207, %v1203
    %v1372 = vpack.c.b16 %v1208, %v1204
    %v1373 = vpack.c.b16 %v1209, %v1205
    %v1374 = vpack.c.b16 %v1214, %v1210
    %v1375 = vpack.c.b16 %v1215, %v1211
    %v1376 = vpack.c.b16 %v1216, %v1212
    %v1377 = vpack.c.b16 %v1217, %v1213
    %v1378 = vpack.c.b16 %v1222, %v1218
    %v1379 = vpack.c.b16 %v1223, %v1219
    %v1380 = vpack.c.b16 %v1224, %v1220
    %v1381 = vpack.c.b16 %v1225, %v1221
    %v1382 = vpack.c.b16 %v1230, %v1226
    %v1383 = vpack.c.b16 %v1231, %v1227
    %v1384 = vpack.c.b16 %v1232, %v1228
    %v1385 = vpack.c.b16 %v1233, %v1229
    %v1386 = vpack.c.b16 %v1238, %v1234
    %v1387 = vpack.c.b16 %v1239, %v1235
    %v1388 = vpack.c.b16 %v1240, %v1236
    %v1389 = vpack.c.b16 %v1241, %v1237
    %v1390 = vpack.c.b16 %v1246, %v1242
    %v1391 = vpack.c.b16 %v1247, %v1243
    %v1392 = vpack.c.b16 %v1248, %v1244
    %v1393 = vpack.c.b16 %v1249, %v1245
    %v1394 = vpack.c.b16 %v1254, %v1250
    %v1395 = vpack.c.b16 %v1255, %v1251
    %v1396 = vpack.c.b16 %v1256, %v1252
    %v1397 = vpack.c.b16 %v1257, %v1253
    %v1398 = vpack.c.b16 %v1262, %v1258
    %v1399 = vpack.c.b16 %v1263, %v1259
    %v1400 = vpack.c.b16 %v1264, %v1260
    %v1401 = vpack.c.b16 %v1265, %v1261
    %v1402 = vpack.c.b16 %v1270, %v1266
    %v1403 = vpack.c.b16 %v1271, %v1267
    %v1404 = vpack.c.b16 %v1272, %v1268
    %v1405 = vpack.c.b16 %v1273, %v1269
    %v1406 = vpack.c.b16 %v1278, %v1274
    %v1407 = vpack.c.b16 %v1279, %v1275
    %v1408 = vpack.c.b16 %v1280, %v1276
    %v1409 = vpack.c.b16 %v1281, %v1277
    %1538 = vmatprep.subr.bf16.mxu0 %v1311
    %1539 = vmatpush1.bf16.msra.mxu0 %v1310
    %1540 = vmatprep.subr.bf16.mxu0 %v1307
    %1541 = vmatpush1.bf16.msra.mxu0 %v1306
    %1542 = vmatprep.subr.bf16.mxu0 %v1303
    %1543 = vmatpush1.bf16.msra.mxu0 %v1302
    %1544 = vmatprep.subr.bf16.mxu0 %v1299
    %1545 = vmatpush1.bf16.msra.mxu0 %v1298
    %1546 = vmatprep.subr.bf16.mxu0 %v1295
    %1547 = vmatpush1.bf16.msra.mxu0 %v1294
    %1548 = vmatprep.subr.bf16.mxu0 %v1291
    %1549 = vmatpush1.bf16.msra.mxu0 %v1290
    %1550 = vmatprep.subr.bf16.mxu0 %v1287
    %1551 = vmatpush1.bf16.msra.mxu0 %v1286
    %1552 = vmatprep.subr.bf16.mxu0 %v1283
    %1553 = vmatpush1.bf16.msra.mxu0 %v1282
    %1554 = vmatprep.subr.bf16.mxu0 %v1343
    %1555 = vmatpush2.bf16.msra.mxu0 %v1342
    %1556 = vmatprep.subr.bf16.mxu0 %v1339
    %1557 = vmatpush2.bf16.msra.mxu0 %v1338
    %1558 = vmatprep.subr.bf16.mxu0 %v1335
    %1559 = vmatpush2.bf16.msra.mxu0 %v1334
    %1560 = vmatprep.subr.bf16.mxu0 %v1331
    %1561 = vmatpush2.bf16.msra.mxu0 %v1330
    %1562 = vmatprep.subr.bf16.mxu0 %v1327
    %1563 = vmatpush2.bf16.msra.mxu0 %v1326
    %1564 = vmatprep.subr.bf16.mxu0 %v1323
    %1565 = vmatpush2.bf16.msra.mxu0 %v1322
    %1566 = vmatprep.subr.bf16.mxu0 %v1319
    %1567 = vmatpush2.bf16.msra.mxu0 %v1318
    %1568 = vmatprep.subr.bf16.mxu0 %v1315
    %1569 = vmatpush2.bf16.msra.mxu0 %v1314
    %1570 = vmatprep.mubr.bf16.mxu0 %v745
    %1571 = vmatmul.mubr.bf16.gmra.mxu0 %v744
    %v1572 = vpop.f32.mrf.mxu0
    %v1573 = vadd.f32 %v881, %v1572
    %v1574 = vpop.f32.mrf.mxu0
    %v1575 = vadd.f32 %v885, %v1574
    %v1576 = vpop.f32.mrf.mxu0
    %v1577 = vadd.f32 %v881, %v1576
    %v1578 = vpop.f32.mrf.mxu0
    %v1579 = vadd.f32 %v885, %v1578
    %1580 = vdwg.mxu0
    %1581 = vmatprep.subr.bf16.mxu0 %v1375
    %1582 = vmatpush1.bf16.msra.mxu0 %v1374
    %1583 = vmatprep.subr.bf16.mxu0 %v1371
    %1584 = vmatpush1.bf16.msra.mxu0 %v1370
    %1585 = vmatprep.subr.bf16.mxu0 %v1367
    %1586 = vmatpush1.bf16.msra.mxu0 %v1366
    %1587 = vmatprep.subr.bf16.mxu0 %v1363
    %1588 = vmatpush1.bf16.msra.mxu0 %v1362
    %1589 = vmatprep.subr.bf16.mxu0 %v1359
    %1590 = vmatpush1.bf16.msra.mxu0 %v1358
    %1591 = vmatprep.subr.bf16.mxu0 %v1355
    %1592 = vmatpush1.bf16.msra.mxu0 %v1354
    %1593 = vmatprep.subr.bf16.mxu0 %v1351
    %1594 = vmatpush1.bf16.msra.mxu0 %v1350
    %1595 = vmatprep.subr.bf16.mxu0 %v1347
    %1596 = vmatpush1.bf16.msra.mxu0 %v1346
    %1597 = vmatprep.subr.bf16.mxu0 %v1407
    %1598 = vmatpush2.bf16.msra.mxu0 %v1406
    %1599 = vmatprep.subr.bf16.mxu0 %v1403
    %1600 = vmatpush2.bf16.msra.mxu0 %v1402
    %1601 = vmatprep.subr.bf16.mxu0 %v1399
    %1602 = vmatpush2.bf16.msra.mxu0 %v1398
    %1603 = vmatprep.subr.bf16.mxu0 %v1395
    %1604 = vmatpush2.bf16.msra.mxu0 %v1394
    %1605 = vmatprep.subr.bf16.mxu0 %v1391
    %1606 = vmatpush2.bf16.msra.mxu0 %v1390
    %1607 = vmatprep.subr.bf16.mxu0 %v1387
    %1608 = vmatpush2.bf16.msra.mxu0 %v1386
    %1609 = vmatprep.subr.bf16.mxu0 %v1383
    %1610 = vmatpush2.bf16.msra.mxu0 %v1382
    %1611 = vmatprep.subr.bf16.mxu0 %v1379
    %1612 = vmatpush2.bf16.msra.mxu0 %v1378
    %1613 = vmatprep.mubr.bf16.mxu0 %v747
    %1614 = vmatmul.mubr.bf16.gmra.mxu0 %v746
    %v1615 = vpop.f32.mrf.mxu0
    %v1616 = vadd.f32 %v1573, %v1615
    %v1617 = vpop.f32.mrf.mxu0
    %v1618 = vadd.f32 %v1575, %v1617
    %v1619 = vpop.f32.mrf.mxu0
    %v1620 = vadd.f32 %v1577, %v1619
    %v1621 = vpop.f32.mrf.mxu0
    %v1622 = vadd.f32 %v1579, %v1621
    %1623 = vdwg.mxu0
    %1624 = vmatprep.subr.bf16.mxu0 %v1313
    %1625 = vmatpush1.bf16.msra.mxu0 %v1312
    %1626 = vmatprep.subr.bf16.mxu0 %v1309
    %1627 = vmatpush1.bf16.msra.mxu0 %v1308
    %1628 = vmatprep.subr.bf16.mxu0 %v1305
    %1629 = vmatpush1.bf16.msra.mxu0 %v1304
    %1630 = vmatprep.subr.bf16.mxu0 %v1301
    %1631 = vmatpush1.bf16.msra.mxu0 %v1300
    %1632 = vmatprep.subr.bf16.mxu0 %v1297
    %1633 = vmatpush1.bf16.msra.mxu0 %v1296
    %1634 = vmatprep.subr.bf16.mxu0 %v1293
    %1635 = vmatpush1.bf16.msra.mxu0 %v1292
    %1636 = vmatprep.subr.bf16.mxu0 %v1289
    %1637 = vmatpush1.bf16.msra.mxu0 %v1288
    %1638 = vmatprep.subr.bf16.mxu0 %v1285
    %1639 = vmatpush1.bf16.msra.mxu0 %v1284
    %1640 = vmatprep.subr.bf16.mxu0 %v1345
    %1641 = vmatpush2.bf16.msra.mxu0 %v1344
    %1642 = vmatprep.subr.bf16.mxu0 %v1341
    %1643 = vmatpush2.bf16.msra.mxu0 %v1340
    %1644 = vmatprep.subr.bf16.mxu0 %v1337
    %1645 = vmatpush2.bf16.msra.mxu0 %v1336
    %1646 = vmatprep.subr.bf16.mxu0 %v1333
    %1647 = vmatpush2.bf16.msra.mxu0 %v1332
    %1648 = vmatprep.subr.bf16.mxu0 %v1329
    %1649 = vmatpush2.bf16.msra.mxu0 %v1328
    %1650 = vmatprep.subr.bf16.mxu0 %v1325
    %1651 = vmatpush2.bf16.msra.mxu0 %v1324
    %1652 = vmatprep.subr.bf16.mxu0 %v1321
    %1653 = vmatpush2.bf16.msra.mxu0 %v1320
    %1654 = vmatprep.subr.bf16.mxu0 %v1317
    %1655 = vmatpush2.bf16.msra.mxu0 %v1316
    %1656 = vmatprep.mubr.bf16.mxu0 %v745
    %1657 = vmatmul.mubr.bf16.gmra.mxu0 %v744
    %v1658 = vpop.f32.mrf.mxu0
    %v1659 = vadd.f32 %v889, %v1658
    %v1660 = vpop.f32.mrf.mxu0
    %v1661 = vadd.f32 %v893, %v1660
    %v1662 = vpop.f32.mrf.mxu0
    %v1663 = vadd.f32 %v889, %v1662
    %v1664 = vpop.f32.mrf.mxu0
    %v1665 = vadd.f32 %v893, %v1664
    %1666 = vdwg.mxu0
    %1667 = vmatprep.subr.bf16.mxu0 %v1377
    %1668 = vmatpush1.bf16.msra.mxu0 %v1376
    %1669 = vmatprep.subr.bf16.mxu0 %v1373
    %1670 = vmatpush1.bf16.msra.mxu0 %v1372
    %1671 = vmatprep.subr.bf16.mxu0 %v1369
    %1672 = vmatpush1.bf16.msra.mxu0 %v1368
    %1673 = vmatprep.subr.bf16.mxu0 %v1365
    %1674 = vmatpush1.bf16.msra.mxu0 %v1364
    %1675 = vmatprep.subr.bf16.mxu0 %v1361
    %1676 = vmatpush1.bf16.msra.mxu0 %v1360
    %1677 = vmatprep.subr.bf16.mxu0 %v1357
    %1678 = vmatpush1.bf16.msra.mxu0 %v1356
    %1679 = vmatprep.subr.bf16.mxu0 %v1353
    %1680 = vmatpush1.bf16.msra.mxu0 %v1352
    %1681 = vmatprep.subr.bf16.mxu0 %v1349
    %1682 = vmatpush1.bf16.msra.mxu0 %v1348
    %1683 = vmatprep.subr.bf16.mxu0 %v1409
    %1684 = vmatpush2.bf16.msra.mxu0 %v1408
    %1685 = vmatprep.subr.bf16.mxu0 %v1405
    %1686 = vmatpush2.bf16.msra.mxu0 %v1404
    %1687 = vmatprep.subr.bf16.mxu0 %v1401
    %1688 = vmatpush2.bf16.msra.mxu0 %v1400
    %1689 = vmatprep.subr.bf16.mxu0 %v1397
    %1690 = vmatpush2.bf16.msra.mxu0 %v1396
    %1691 = vmatprep.subr.bf16.mxu0 %v1393
    %1692 = vmatpush2.bf16.msra.mxu0 %v1392
    %1693 = vmatprep.subr.bf16.mxu0 %v1389
    %1694 = vmatpush2.bf16.msra.mxu0 %v1388
    %1695 = vmatprep.subr.bf16.mxu0 %v1385
    %1696 = vmatpush2.bf16.msra.mxu0 %v1384
    %1697 = vmatprep.subr.bf16.mxu0 %v1381
    %1698 = vmatpush2.bf16.msra.mxu0 %v1380
    %1699 = vmatprep.mubr.bf16.mxu0 %v747
    %1700 = vmatmul.mubr.bf16.gmra.mxu0 %v746
    %v1701 = vpop.f32.mrf.mxu0
    %v1702 = vadd.f32 %v1659, %v1701
    %v1703 = vpop.f32.mrf.mxu0
    %v1704 = vadd.f32 %v1661, %v1703
    %v1705 = vpop.f32.mrf.mxu0
    %v1706 = vadd.f32 %v1663, %v1705
    %v1707 = vpop.f32.mrf.mxu0
    %v1708 = vadd.f32 %v1665, %v1707
    %1709 = vdwg.mxu0
    %v1710 = vmax.f32 %v1616, 0.0
    %v1711 = vmax.f32 %v1618, 0.0
    %v1712 = vmax.f32 %v1702, 0.0
    %v1713 = vmax.f32 %v1704, 0.0
    %v1714 = vmax.f32 %v1620, 0.0
    %v1715 = vmax.f32 %v1622, 0.0
    %v1716 = vmax.f32 %v1706, 0.0
    %v1717 = vmax.f32 %v1708, 0.0
    %v1718 = vpack.c.bf16 %v1714, %v1710
    %v1719 = vpack.c.bf16 %v1715, %v1711
    %v1720 = vpack.c.bf16 %v1716, %v1712
    %v1721 = vpack.c.bf16 %v1717, %v1713
    %v1722 = vld [vmem:[#allocation9] sm:$0xf]
    %v1723 = vld [vmem:[#allocation9 + $0x4] sm:$0xf]
    %v1724 = vld [vmem:[#allocation9 + $0x8] sm:$0xf]
    %v1725 = vld [vmem:[#allocation9 + $0xc] sm:$0xf]
    %v1726 = vld [vmem:[#allocation9 + $0x10] sm:$0xf]
    %v1727 = vld [vmem:[#allocation9 + $0x14] sm:$0xf]
    %v1728 = vld [vmem:[#allocation9 + $0x18] sm:$0xf]
    %v1729 = vld [vmem:[#allocation9 + $0x1c] sm:$0xf]
    %v1730 = vld [vmem:[#allocation9 + $0x20] sm:$0xf]
    %v1731 = vld [vmem:[#allocation9 + $0x24] sm:$0xf]
    %v1732 = vld [vmem:[#allocation9 + $0x28] sm:$0xf]
    %v1733 = vld [vmem:[#allocation9 + $0x2c] sm:$0xf]
    %v1734 = vld [vmem:[#allocation9 + $0x30] sm:$0xf]
    %v1735 = vld [vmem:[#allocation9 + $0x34] sm:$0xf]
    %v1736 = vld [vmem:[#allocation9 + $0x38] sm:$0xf]
    %v1737 = vld [vmem:[#allocation9 + $0x3c] sm:$0xf]
    %v1738 = vld [vmem:[#allocation9 + $0x40] sm:$0xf]
    %v1739 = vld [vmem:[#allocation9 + $0x44] sm:$0xf]
    %v1740 = vld [vmem:[#allocation9 + $0x48] sm:$0xf]
    %v1741 = vld [vmem:[#allocation9 + $0x4c] sm:$0xf]
    %v1742 = vld [vmem:[#allocation9 + $0x50] sm:$0xf]
    %v1743 = vld [vmem:[#allocation9 + $0x54] sm:$0xf]
    %v1744 = vld [vmem:[#allocation9 + $0x58] sm:$0xf]
    %v1745 = vld [vmem:[#allocation9 + $0x5c] sm:$0xf]
    %v1746 = vld [vmem:[#allocation9 + $0x60] sm:$0xf]
    %v1747 = vld [vmem:[#allocation9 + $0x64] sm:$0xf]
    %v1748 = vld [vmem:[#allocation9 + $0x68] sm:$0xf]
    %v1749 = vld [vmem:[#allocation9 + $0x6c] sm:$0xf]
    %v1750 = vld [vmem:[#allocation9 + $0x70] sm:$0xf]
    %v1751 = vld [vmem:[#allocation9 + $0x74] sm:$0xf]
    %v1752 = vld [vmem:[#allocation9 + $0x78] sm:$0xf]
    %v1753 = vld [vmem:[#allocation9 + $0x7c] sm:$0xf]
    %v1754 = vld [vmem:[#allocation9 + $0x80] sm:$0xf]
    %v1755 = vld [vmem:[#allocation9 + $0x84] sm:$0xf]
    %v1756 = vld [vmem:[#allocation9 + $0x88] sm:$0xf]
    %v1757 = vld [vmem:[#allocation9 + $0x8c] sm:$0xf]
    %v1758 = vld [vmem:[#allocation9 + $0x90] sm:$0xf]
    %v1759 = vld [vmem:[#allocation9 + $0x94] sm:$0xf]
    %v1760 = vld [vmem:[#allocation9 + $0x98] sm:$0xf]
    %v1761 = vld [vmem:[#allocation9 + $0x9c] sm:$0xf]
    %v1762 = vld [vmem:[#allocation9 + $0xa0] sm:$0xf]
    %v1763 = vld [vmem:[#allocation9 + $0xa4] sm:$0xf]
    %v1764 = vld [vmem:[#allocation9 + $0xa8] sm:$0xf]
    %v1765 = vld [vmem:[#allocation9 + $0xac] sm:$0xf]
    %v1766 = vld [vmem:[#allocation9 + $0xb0] sm:$0xf]
    %v1767 = vld [vmem:[#allocation9 + $0xb4] sm:$0xf]
    %v1768 = vld [vmem:[#allocation9 + $0xb8] sm:$0xf]
    %v1769 = vld [vmem:[#allocation9 + $0xbc] sm:$0xf]
    %v1770 = vld [vmem:[#allocation9 + $0xc0] sm:$0xf]
    %v1771 = vld [vmem:[#allocation9 + $0xc4] sm:$0xf]
    %v1772 = vld [vmem:[#allocation9 + $0xc8] sm:$0xf]
    %v1773 = vld [vmem:[#allocation9 + $0xcc] sm:$0xf]
    %v1774 = vld [vmem:[#allocation9 + $0xd0] sm:$0xf]
    %v1775 = vld [vmem:[#allocation9 + $0xd4] sm:$0xf]
    %v1776 = vld [vmem:[#allocation9 + $0xd8] sm:$0xf]
    %v1777 = vld [vmem:[#allocation9 + $0xdc] sm:$0xf]
    %v1778 = vld [vmem:[#allocation9 + $0xe0] sm:$0xf]
    %v1779 = vld [vmem:[#allocation9 + $0xe4] sm:$0xf]
    %v1780 = vld [vmem:[#allocation9 + $0xe8] sm:$0xf]
    %v1781 = vld [vmem:[#allocation9 + $0xec] sm:$0xf]
    %v1782 = vld [vmem:[#allocation9 + $0xf0] sm:$0xf]
    %v1783 = vld [vmem:[#allocation9 + $0xf4] sm:$0xf]
    %v1784 = vld [vmem:[#allocation9 + $0xf8] sm:$0xf]
    %v1785 = vld [vmem:[#allocation9 + $0xfc] sm:$0xf]
    %v1786 = vld [vmem:[%s11] sm:$0x1]
    %v1788 = vlaneseq
    %v1789 = vshrl.u32 %v1788, 7
    %v1790 = vsub.s32 0, %v1789
    %v1791 = vrot.slane %v1786, %v1790
    %v1857 = vunpack.c.l.b16 %v1722
    %v1858 = vunpack.c.l.b16 %v1723
    %v1859 = vunpack.c.l.b16 %v1724
    %v1860 = vunpack.c.l.b16 %v1725
    %v1861 = vunpack.c.l.b16 %v1726
    %v1862 = vunpack.c.l.b16 %v1727
    %v1863 = vunpack.c.l.b16 %v1728
    %v1864 = vunpack.c.l.b16 %v1729
    %v1865 = vunpack.c.l.b16 %v1730
    %v1866 = vunpack.c.l.b16 %v1731
    %v1867 = vunpack.c.l.b16 %v1732
    %v1868 = vunpack.c.l.b16 %v1733
    %v1869 = vunpack.c.l.b16 %v1734
    %v1870 = vunpack.c.l.b16 %v1735
    %v1871 = vunpack.c.l.b16 %v1736
    %v1872 = vunpack.c.l.b16 %v1737
    %v1873 = vunpack.c.l.b16 %v1738
    %v1874 = vunpack.c.l.b16 %v1739
    %v1875 = vunpack.c.l.b16 %v1740
    %v1876 = vunpack.c.l.b16 %v1741
    %v1877 = vunpack.c.l.b16 %v1742
    %v1878 = vunpack.c.l.b16 %v1743
    %v1879 = vunpack.c.l.b16 %v1744
    %v1880 = vunpack.c.l.b16 %v1745
    %v1881 = vunpack.c.l.b16 %v1746
    %v1882 = vunpack.c.l.b16 %v1747
    %v1883 = vunpack.c.l.b16 %v1748
    %v1884 = vunpack.c.l.b16 %v1749
    %v1885 = vunpack.c.l.b16 %v1750
    %v1886 = vunpack.c.l.b16 %v1751
    %v1887 = vunpack.c.l.b16 %v1752
    %v1888 = vunpack.c.l.b16 %v1753
    %v1889 = vunpack.c.l.b16 %v1754
    %v1890 = vunpack.c.l.b16 %v1755
    %v1891 = vunpack.c.l.b16 %v1756
    %v1892 = vunpack.c.l.b16 %v1757
    %v1893 = vunpack.c.l.b16 %v1758
    %v1894 = vunpack.c.l.b16 %v1759
    %v1895 = vunpack.c.l.b16 %v1760
    %v1896 = vunpack.c.l.b16 %v1761
    %v1897 = vunpack.c.l.b16 %v1762
    %v1898 = vunpack.c.l.b16 %v1763
    %v1899 = vunpack.c.l.b16 %v1764
    %v1900 = vunpack.c.l.b16 %v1765
    %v1901 = vunpack.c.l.b16 %v1766
    %v1902 = vunpack.c.l.b16 %v1767
    %v1903 = vunpack.c.l.b16 %v1768
    %v1904 = vunpack.c.l.b16 %v1769
    %v1905 = vunpack.c.l.b16 %v1770
    %v1906 = vunpack.c.l.b16 %v1771
    %v1907 = vunpack.c.l.b16 %v1772
    %v1908 = vunpack.c.l.b16 %v1773
    %v1909 = vunpack.c.l.b16 %v1774
    %v1910 = vunpack.c.l.b16 %v1775
    %v1911 = vunpack.c.l.b16 %v1776
    %v1912 = vunpack.c.l.b16 %v1777
    %v1913 = vunpack.c.l.b16 %v1778
    %v1914 = vunpack.c.l.b16 %v1779
    %v1915 = vunpack.c.l.b16 %v1780
    %v1916 = vunpack.c.l.b16 %v1781
    %v1917 = vunpack.c.l.b16 %v1782
    %v1918 = vunpack.c.l.b16 %v1783
    %v1919 = vunpack.c.l.b16 %v1784
    %v1920 = vunpack.c.l.b16 %v1785
    %v1921 = vpack.c.b16 %v1858, %v1857
    %v1922 = vpack.c.b16 %v1860, %v1859
    %v1923 = vpack.c.b16 %v1862, %v1861
    %v1924 = vpack.c.b16 %v1864, %v1863
    %v1925 = vpack.c.b16 %v1866, %v1865
    %v1926 = vpack.c.b16 %v1868, %v1867
    %v1927 = vpack.c.b16 %v1870, %v1869
    %v1928 = vpack.c.b16 %v1872, %v1871
    %v1929 = vpack.c.b16 %v1874, %v1873
    %v1930 = vpack.c.b16 %v1876, %v1875
    %v1931 = vpack.c.b16 %v1878, %v1877
    %v1932 = vpack.c.b16 %v1880, %v1879
    %v1933 = vpack.c.b16 %v1882, %v1881
    %v1934 = vpack.c.b16 %v1884, %v1883
    %v1935 = vpack.c.b16 %v1886, %v1885
    %v1936 = vpack.c.b16 %v1888, %v1887
    %v1937 = vpack.c.b16 %v1890, %v1889
    %v1938 = vpack.c.b16 %v1892, %v1891
    %v1939 = vpack.c.b16 %v1894, %v1893
    %v1940 = vpack.c.b16 %v1896, %v1895
    %v1941 = vpack.c.b16 %v1898, %v1897
    %v1942 = vpack.c.b16 %v1900, %v1899
    %v1943 = vpack.c.b16 %v1902, %v1901
    %v1944 = vpack.c.b16 %v1904, %v1903
    %v1945 = vpack.c.b16 %v1906, %v1905
    %v1946 = vpack.c.b16 %v1908, %v1907
    %v1947 = vpack.c.b16 %v1910, %v1909
    %v1948 = vpack.c.b16 %v1912, %v1911
    %v1949 = vpack.c.b16 %v1914, %v1913
    %v1950 = vpack.c.b16 %v1916, %v1915
    %v1951 = vpack.c.b16 %v1918, %v1917
    %v1952 = vpack.c.b16 %v1920, %v1919
    %1985 = vmatprep.subr.bf16.mxu0 0
    %1986 = vmatpush1.bf16.msra.mxu0 %v1928
    %1987 = vmatprep.subr.bf16.mxu0 0
    %1988 = vmatpush1.bf16.msra.mxu0 %v1927
    %1989 = vmatprep.subr.bf16.mxu0 0
    %1990 = vmatpush1.bf16.msra.mxu0 %v1926
    %1991 = vmatprep.subr.bf16.mxu0 0
    %1992 = vmatpush1.bf16.msra.mxu0 %v1925
    %1993 = vmatprep.subr.bf16.mxu0 0
    %1994 = vmatpush1.bf16.msra.mxu0 %v1924
    %1995 = vmatprep.subr.bf16.mxu0 0
    %1996 = vmatpush1.bf16.msra.mxu0 %v1923
    %1997 = vmatprep.subr.bf16.mxu0 0
    %1998 = vmatpush1.bf16.msra.mxu0 %v1922
    %1999 = vmatprep.subr.bf16.mxu0 0
    %2000 = vmatpush1.bf16.msra.mxu0 %v1921
    %2001 = vmatprep.subr.bf16.mxu0 0
    %2002 = vmatpush2.bf16.msra.mxu0 %v1936
    %2003 = vmatprep.subr.bf16.mxu0 0
    %2004 = vmatpush2.bf16.msra.mxu0 %v1935
    %2005 = vmatprep.subr.bf16.mxu0 0
    %2006 = vmatpush2.bf16.msra.mxu0 %v1934
    %2007 = vmatprep.subr.bf16.mxu0 0
    %2008 = vmatpush2.bf16.msra.mxu0 %v1933
    %2009 = vmatprep.subr.bf16.mxu0 0
    %2010 = vmatpush2.bf16.msra.mxu0 %v1932
    %2011 = vmatprep.subr.bf16.mxu0 0
    %2012 = vmatpush2.bf16.msra.mxu0 %v1931
    %2013 = vmatprep.subr.bf16.mxu0 0
    %2014 = vmatpush2.bf16.msra.mxu0 %v1930
    %2015 = vmatprep.subr.bf16.mxu0 0
    %2016 = vmatpush2.bf16.msra.mxu0 %v1929
    %2017 = vmatprep.mubr.bf16.mxu0 %v1719
    %2018 = vmatmul.mubr.bf16.gmra.mxu0 %v1718
    %v2019 = vpop.f32.mrf.mxu0
    %v2020 = vadd.f32 %v1791, %v2019
    %v2021 = vpop.f32.mrf.mxu0
    %v2022 = vpop.f32.mrf.mxu0
    %v2023 = vadd.f32 %v1791, %v2022
    %v2024 = vpop.f32.mrf.mxu0
    %2025 = vdwg.mxu0
    %2026 = vmatprep.subr.bf16.mxu0 0
    %2027 = vmatpush1.bf16.msra.mxu0 %v1944
    %2028 = vmatprep.subr.bf16.mxu0 0
    %2029 = vmatpush1.bf16.msra.mxu0 %v1943
    %2030 = vmatprep.subr.bf16.mxu0 0
    %2031 = vmatpush1.bf16.msra.mxu0 %v1942
    %2032 = vmatprep.subr.bf16.mxu0 0
    %2033 = vmatpush1.bf16.msra.mxu0 %v1941
    %2034 = vmatprep.subr.bf16.mxu0 0
    %2035 = vmatpush1.bf16.msra.mxu0 %v1940
    %2036 = vmatprep.subr.bf16.mxu0 0
    %2037 = vmatpush1.bf16.msra.mxu0 %v1939
    %2038 = vmatprep.subr.bf16.mxu0 0
    %2039 = vmatpush1.bf16.msra.mxu0 %v1938
    %2040 = vmatprep.subr.bf16.mxu0 0
    %2041 = vmatpush1.bf16.msra.mxu0 %v1937
    %2042 = vmatprep.subr.bf16.mxu0 0
    %2043 = vmatpush2.bf16.msra.mxu0 %v1952
    %2044 = vmatprep.subr.bf16.mxu0 0
    %2045 = vmatpush2.bf16.msra.mxu0 %v1951
    %2046 = vmatprep.subr.bf16.mxu0 0
    %2047 = vmatpush2.bf16.msra.mxu0 %v1950
    %2048 = vmatprep.subr.bf16.mxu0 0
    %2049 = vmatpush2.bf16.msra.mxu0 %v1949
    %2050 = vmatprep.subr.bf16.mxu0 0
    %2051 = vmatpush2.bf16.msra.mxu0 %v1948
    %2052 = vmatprep.subr.bf16.mxu0 0
    %2053 = vmatpush2.bf16.msra.mxu0 %v1947
    %2054 = vmatprep.subr.bf16.mxu0 0
    %2055 = vmatpush2.bf16.msra.mxu0 %v1946
    %2056 = vmatprep.subr.bf16.mxu0 0
    %2057 = vmatpush2.bf16.msra.mxu0 %v1945
    %2058 = vmatprep.mubr.bf16.mxu0 %v1721
    %2059 = vmatmul.mubr.bf16.gmra.mxu0 %v1720
    %v2060 = vpop.f32.mrf.mxu0
    %v2061 = vadd.f32 %v2020, %v2060
    %v2062 = vpop.f32.mrf.mxu0
    %v2063 = vpop.f32.mrf.mxu0
    %v2064 = vadd.f32 %v2023, %v2063
    %v2065 = vpop.f32.mrf.mxu0
    %2066 = vdwg.mxu0
    %2067 = vst [vmem:[%s12] sm:$0xff] %v2061
    %2068 = vst [vmem:[%s12 + $0x8] sm:$0xff] %v2064
    // Predicated region
    $region70: #{caption_with_decoder_forward.1} parent=1 // pred_check
      _
    $region71: #{caption_with_decoder_forward.1} parent=1 // pred_check_branch
      %2070 = sbr.rel (0) target = $region73
    $region72: #{caption_with_decoder_forward.1} parent=1 // pred_region
      _
    $region73: #{caption_with_decoder_forward.1} parent=1 // pred_fallthru
      _
    // Predicated region
    $region74: #{caption_with_decoder_forward.1} parent=1 // pred_check
      _
    $region75: #{caption_with_decoder_forward.1} parent=1 // pred_check_branch
      %2072 = sbr.rel (0) target = $region77
    $region76: #{caption_with_decoder_forward.1} parent=1 // pred_region
      _
    $region77: #{caption_with_decoder_forward.1} parent=1 // pred_fallthru
      _
    %2073 = vsyncpa [#allocation3], 1
    %2074 = vsyncpa [#allocation5], 1
    %2075 = vsyncpa [#allocation8], 1

</llo_original>
